<compile_context>
chip_gen: v6e
topology: v6e:2x2x1
jax: 0.10.0
libtpu: 0.0.40
codegen_flags: <defaults>
</compile_context>

<pallas_src>
import functools

import jax
import jax.numpy as jnp
from jax.experimental import pallas as pl
from jax.experimental.pallas import tpu as pltpu

GROUPS = 4
EPS = 1e-5


def _dwconv_gn_pw_kernel(x_ref, w1_ref, b1_ref, g_ref, bt_ref,
                         pg_ref, pgt_ref, w2_ref, b2_ref,
                         o_ref, xpad_ref, *, C, groups, eps):
    # x_ref:    (1, D, H, W*C)       one unpadded sample, W folded into lanes
    # w1_ref:   (3, 3, 3, W*C)       depthwise taps (per-channel, tiled over W)
    # b1_ref:   (1, W*C)             depthwise bias (tiled over W)
    # g_ref:    (1, W*C)             GroupNorm gamma (tiled over W)
    # bt_ref:   (1, W*C)             GroupNorm beta (tiled over W)
    # pg_ref:   (W*C, G)             lane -> group one-hot
    # pgt_ref:  (G, W*C)             group -> lane one-hot (transpose)
    # w2_ref:   (W*C, W*Cout) bf16   block-diagonal folded pointwise weight
    # b2_ref:   (1, W*Cout)          pointwise bias (tiled over W)
    # o_ref:    (1, D*H, W*Cout)     lane-dense output block
    # xpad_ref: (D+2, H+2, (W+2)*C)  VMEM halo scratch (input dtype)
    _, D, H, WC = x_ref.shape
    W = WC // C
    gsize = C // groups

    # ---- zero-pad into VMEM scratch (no HBM pre-pad round trip) ------------
    xpad_ref[...] = jnp.zeros(xpad_ref.shape, xpad_ref.dtype)
    xpad_ref[1:1 + D, 1:1 + H, C:C + WC] = x_ref[0]

    # ---- depthwise 3x3x3 conv (stride=1, dilation=1, pad=1) -----------------
    # Hoist the 9 minor-dim shifted views; kd slices inside the tap loop only
    # touch the leading dim (cheap address offsets). Casts happen per-view
    # (no upfront full-volume f32 copy).
    views = []
    for kh in range(3):
        for kw in range(3):
            views.append(
                xpad_ref[:, kh:kh + H, kw * C:kw * C + WC].astype(jnp.float32))

    w1 = w1_ref[...].astype(jnp.float32)                # (3, 3, 3, WC)
    acc = jnp.zeros((D, H, WC), jnp.float32)
    for kd in range(3):
        for kh in range(3):
            for kw in range(3):
                v = views[kh * 3 + kw]                  # (D+2, H, WC)
                acc = acc + v[kd:kd + D] * w1[kd, kh, kw]
    acc = acc + b1_ref[...].astype(jnp.float32)         # (1, WC) broadcast

    # ---- GroupNorm(groups, C): two-pass (mean, then centered variance) -----
    flat = acc.reshape(D * H, WC)                       # leading/sublane merge
    pg = pg_ref[...]                                    # (WC, G)
    pgt = pgt_ref[...]                                  # (G, WC)
    inv_cnt = jnp.float32(1.0 / (D * H * W * gsize))

    s = jnp.sum(flat, axis=0, keepdims=True)                            # (1, WC)
    mean_g = jnp.dot(s, pg, preferred_element_type=jnp.float32) * inv_cnt
    mean_l = jnp.dot(mean_g, pgt, preferred_element_type=jnp.float32)   # (1, WC)

    dcen = flat - mean_l
    ss = jnp.sum(dcen * dcen, axis=0, keepdims=True)                    # (1, WC)
    var_g = jnp.dot(ss, pg, preferred_element_type=jnp.float32) * inv_cnt
    inv_l = jnp.dot(jax.lax.rsqrt(var_g + eps), pgt,
                    preferred_element_type=jnp.float32)                 # (1, WC)

    y = dcen * inv_l * g_ref[...].astype(jnp.float32) \
        + bt_ref[...].astype(jnp.float32)

    # ---- pointwise 1x1x1 conv on the MXU (bf16 operands, f32 accumulate) ---
    out = jnp.dot(y.astype(jnp.bfloat16), w2_ref[...],
                  preferred_element_type=jnp.float32)   # (D*H, W*Cout)
    out = out + b2_ref[...].astype(jnp.float32)

    o_ref[0] = out.astype(o_ref.dtype)


def _padded_tile_bytes(shape, itemsize):
    """Rough VMEM footprint of an array, padding the minor dims to (8, 128)."""
    s = list(shape)
    while len(s) < 2:
        s.insert(0, 1)
    s[-1] = ((s[-1] + 127) // 128) * 128
    s[-2] = ((s[-2] + 7) // 8) * 8
    n = itemsize
    for v in s:
        n *= v
    return n


@jax.jit
def depthwise_conv3d_forward(x_ncdhw, w1, b1, gamma, beta, w2, b2):
    """x_ncdhw: (N, C, D, H, W). Returns (N, Cout, D, H, W)."""
    N, C, D, H, W = x_ncdhw.shape
    Cout = w2.shape[0]
    G = GROUPS
    if C % G != 0:
        raise ValueError(f"GroupNorm({G}, C): C={C} must be divisible by {G}")
    gsize = C // G
    WC, WCo = W * C, W * Cout
    itemsize = jnp.dtype(x_ncdhw.dtype).itemsize

    # ---- glue: fold W into the lane dimension (layout plumbing, no pad) ----
    x_f = jnp.transpose(x_ncdhw, (0, 2, 3, 4, 1)).reshape(N, D, H, WC)

    # ---- fold / tile parameters once in the wrapper (hoisted constants) ----
    w1_t = jnp.transpose(w1.reshape(C, 3, 3, 3), (1, 2, 3, 0))          # (3,3,3,C)
    w1_f = jnp.tile(w1_t, (1, 1, 1, W)).astype(jnp.float32)             # (3,3,3,WC)
    b1_f = jnp.tile(b1.reshape(1, C), (1, W)).astype(jnp.float32)       # (1, WC)
    g_f = jnp.tile(gamma.reshape(1, C), (1, W)).astype(jnp.float32)
    bt_f = jnp.tile(beta.reshape(1, C), (1, W)).astype(jnp.float32)

    # lane -> group one-hot matrices (replaces the in-kernel CxC iota mask)
    grp = jnp.tile(jnp.arange(C, dtype=jnp.int32) // gsize, W)          # (WC,)
    pg = (grp[:, None] == jnp.arange(G, dtype=jnp.int32)[None, :]
          ).astype(jnp.float32)                                          # (WC, G)
    pgt = jnp.transpose(pg)                                              # (G, WC)

    # block-diagonal folded pointwise weight -> lane-dense MXU output
    w2_mat = w2.reshape(Cout, C)
    w2_f = jnp.kron(jnp.eye(W, dtype=jnp.float32),
                    jnp.transpose(w2_mat).astype(jnp.float32)
                    ).astype(jnp.bfloat16)                               # (WC, WCo)
    b2_f = jnp.tile(b2.reshape(1, Cout), (1, W)).astype(jnp.float32)     # (1, WCo)

    # ---- VMEM budget (explicit, instead of the 32 MiB scoped default) ------
    xblk = _padded_tile_bytes((1, D, H, WC), itemsize)
    oblk = _padded_tile_bytes((1, D * H, WCo), itemsize)
    scratch_b = _padded_tile_bytes((D + 2, H + 2, (W + 2) * C), itemsize)
    work_b = (9 * _padded_tile_bytes((D + 2, H, WC), 4)
              + 6 * _padded_tile_bytes((D * H, WC), 4)
              + 2 * _padded_tile_bytes((D * H, WCo), 4))
    param_b = 2 * (_padded_tile_bytes((3, 3, 3, WC), 4)
                   + 4 * _padded_tile_bytes((1, WC), 4)
                   + _padded_tile_bytes((WC, G), 4)
                   + _padded_tile_bytes((G, WC), 4)
                   + _padded_tile_bytes((WC, WCo), 2)
                   + _padded_tile_bytes((1, WCo), 4))
    vmem_limit = int(min(100 << 20,
                         max(32 << 20,
                             2 * (xblk + oblk) + scratch_b + work_b + param_b
                             + (8 << 20))))

    S = D * H * W
    cost = pl.CostEstimate(
        flops=N * (2 * 27 * S * C + 10 * S * C + 2 * S * C * Cout),
        transcendentals=N * G,
        bytes_accessed=N * S * (C + Cout) * itemsize)

    kernel = functools.partial(_dwconv_gn_pw_kernel, C=C, groups=G, eps=EPS)

    out_f = pl.pallas_call(
        kernel,
        out_shape=jax.ShapeDtypeStruct((N, D * H, WCo), x_ncdhw.dtype),
        grid_spec=pltpu.PrefetchScalarGridSpec(
            num_scalar_prefetch=0,
            grid=(N,),
            in_specs=[
                pl.BlockSpec((1, D, H, WC), lambda n: (n, 0, 0, 0)),
                pl.BlockSpec((3, 3, 3, WC), lambda n: (0, 0, 0, 0)),
                pl.BlockSpec((1, WC), lambda n: (0, 0)),
                pl.BlockSpec((1, WC), lambda n: (0, 0)),
                pl.BlockSpec((1, WC), lambda n: (0, 0)),
                pl.BlockSpec((WC, G), lambda n: (0, 0)),
                pl.BlockSpec((G, WC), lambda n: (0, 0)),
                pl.BlockSpec((WC, WCo), lambda n: (0, 0)),
                pl.BlockSpec((1, WCo), lambda n: (0, 0)),
            ],
            out_specs=pl.BlockSpec((1, D * H, WCo), lambda n: (n, 0, 0)),
            scratch_shapes=[
                pltpu.VMEM((D + 2, H + 2, (W + 2) * C), x_ncdhw.dtype)],
        ),
        compiler_params=pltpu.CompilerParams(
            dimension_semantics=("parallel",),
            vmem_limit_bytes=vmem_limit),
        cost_estimate=cost,
    )(x_f, w1_f, b1_f, g_f, bt_f, pg, pgt, w2_f, b2_f)

    out = out_f.reshape(N, D, H, W, Cout)
    return jnp.transpose(out, (0, 4, 1, 2, 3))                           # NCDHW


def _reference_forward(x_ncdhw, w1, b1, gamma, beta, w2, b2):
    """Pure-JAX reference matching PyTorch semantics (for validation)."""
    N, C, D, H, W = x_ncdhw.shape
    Cout = w2.shape[0]
    x = jnp.transpose(x_ncdhw, (0, 2, 3, 4, 1))                          # NDHWC
    rhs = jnp.transpose(w1, (2, 3, 4, 1, 0))                             # DHWIO
    y = jax.lax.conv_general_dilated(
        x, rhs, window_strides=(1, 1, 1),
        padding=((1, 1), (1, 1), (1, 1)),
        dimension_numbers=("NDHWC", "DHWIO", "NDHWC"),
        feature_group_count=C)
    y = y + b1.reshape(1, 1, 1, 1, C)
    gsize = C // GROUPS
    yg = y.reshape(N, D, H, W, GROUPS, gsize)
    mean = jnp.mean(yg, axis=(1, 2, 3, 5), keepdims=True)
    var = jnp.mean((yg - mean) ** 2, axis=(1, 2, 3, 5), keepdims=True)
    yn = ((yg - mean) / jnp.sqrt(var + EPS)).reshape(N, D, H, W, C)
    yn = yn * gamma.reshape(1, 1, 1, 1, C) + beta.reshape(1, 1, 1, 1, C)
    out = jnp.einsum("ndhwc,oc->ndhwo", yn, w2.reshape(Cout, C))
    out = out + b2.reshape(1, 1, 1, 1, Cout)
    return jnp.transpose(out, (0, 4, 1, 2, 3))


if __name__ == "__main__":
    N, C_in, C_out = 2, 8, 16
    D = H = W = 8

    key = jax.random.PRNGKey(0)
    k = jax.random.split(key, 8)
    x = jax.random.normal(k[0], (N, C_in, D, H, W), jnp.float32)
    # nn.Conv3d(dim_in, dim_in, 3, groups=dim_in): weight (C_in, 1, 3, 3, 3)
    w1 = jax.random.normal(k[1], (C_in, 1, 3, 3, 3), jnp.float32) * 0.2
    b1 = jax.random.normal(k[2], (C_in,), jnp.float32) * 0.1
    # nn.GroupNorm(4, dim_in): affine params per channel
    gamma = 1.0 + 0.1 * jax.random.normal(k[3], (C_in,), jnp.float32)
    beta = 0.1 * jax.random.normal(k[4], (C_in,), jnp.float32)
    # nn.Conv3d(dim_in, dim_out, 1): weight (C_out, C_in, 1, 1, 1)
    w2 = jax.random.normal(k[5], (C_out, C_in, 1, 1, 1), jnp.float32) * 0.2
    b2 = jax.random.normal(k[6], (C_out,), jnp.float32) * 0.1

    out = depthwise_conv3d_forward(x, w1, b1, gamma, beta, w2, b2)
    out = jax.block_until_ready(out)

    ref = _reference_forward(x, w1, b1, gamma, beta, w2, b2)
    assert out.shape == (N, C_out, D, H, W)
    # bf16 MXU operands on the pointwise conv -> slightly looser tolerance.
    assert jnp.allclose(out, ref, rtol=2e-2, atol=2e-2), (
        float(jnp.max(jnp.abs(out - ref))))

    print("KERNEL_OK")
</pallas_src>

<mosaic_0001>
module attributes {stable_mosaic.version = 11 : i64} {
  func.func @_dwconv_gn_pw_kernel(%arg0: i32, %arg1: memref<1x8x8x64xf32, #tpu.memory_space<vmem>>, %arg2: memref<3x3x3x64xf32, #tpu.memory_space<vmem>>, %arg3: memref<1x64xf32, #tpu.memory_space<vmem>>, %arg4: memref<1x64xf32, #tpu.memory_space<vmem>>, %arg5: memref<1x64xf32, #tpu.memory_space<vmem>>, %arg6: memref<64x4xf32, #tpu.memory_space<vmem>>, %arg7: memref<4x64xf32, #tpu.memory_space<vmem>>, %arg8: memref<64x128xbf16, #tpu.memory_space<vmem>>, %arg9: memref<1x128xf32, #tpu.memory_space<vmem>>, %arg10: memref<1x64x128xf32, #tpu.memory_space<vmem>>, %arg11: memref<10x10x80xf32, #tpu.memory_space<vmem>>) attributes {dimension_semantics = [#tpu.dimension_semantics<parallel>], iteration_bounds = array<i64: 2>, scalar_prefetch = 0 : i64, scratch_operands = 1 : i64, tpu.core_type = #tpu.core_type<tc>, window_params = [{transform_indices = @transform_0, window_bounds = array<i64: 1, 8, 8, 64>}, {pipeline_mode = #tpu.pipeline_mode<synchronous>, transform_indices = @transform_1, window_bounds = array<i64: 3, 3, 3, 64>}, {pipeline_mode = #tpu.pipeline_mode<synchronous>, transform_indices = @transform_2, window_bounds = array<i64: 1, 64>}, {pipeline_mode = #tpu.pipeline_mode<synchronous>, transform_indices = @transform_3, window_bounds = array<i64: 1, 64>}, {pipeline_mode = #tpu.pipeline_mode<synchronous>, transform_indices = @transform_4, window_bounds = array<i64: 1, 64>}, {pipeline_mode = #tpu.pipeline_mode<synchronous>, transform_indices = @transform_5, window_bounds = array<i64: 64, 4>}, {pipeline_mode = #tpu.pipeline_mode<synchronous>, transform_indices = @transform_6, window_bounds = array<i64: 4, 64>}, {pipeline_mode = #tpu.pipeline_mode<synchronous>, transform_indices = @transform_7, window_bounds = array<i64: 64, 128>}, {pipeline_mode = #tpu.pipeline_mode<synchronous>, transform_indices = @transform_8, window_bounds = array<i64: 1, 128>}, {transform_indices = @transform_9, window_bounds = array<i64: 1, 64, 128>}]} {
    %cst = arith.constant 0.000000e+00 : f32
    %0 = vector.broadcast %cst : f32 to vector<10x10x80xf32>
    %c0 = arith.constant 0 : index
    %c0_0 = arith.constant 0 : index
    %c0_1 = arith.constant 0 : index
    %1 = vector.load %arg11[%c0, %c0_0, %c0_1] : memref<10x10x80xf32, #tpu.memory_space<vmem>>, vector<10x10x80xf32>
    tpu.vector_store %arg11[%c0, %c0_0, %c0_1], %0 {strides = array<i32>} : memref<10x10x80xf32, #tpu.memory_space<vmem>>, vector<10x10x80xf32>,
    %c0_2 = arith.constant 0 : index
    %c0_3 = arith.constant 0 : index
    %c0_4 = arith.constant 0 : index
    %c0_5 = arith.constant 0 : index
    %2 = vector.load %arg1[%c0_2, %c0_3, %c0_4, %c0_5] : memref<1x8x8x64xf32, #tpu.memory_space<vmem>>, vector<1x8x8x64xf32>
    %3 = vector.shape_cast %2 : vector<1x8x8x64xf32> to vector<8x8x64xf32>
    %c1 = arith.constant 1 : index
    %c1_6 = arith.constant 1 : index
    %c8 = arith.constant 8 : index
    %4 = vector.load %arg11[%c1, %c1_6, %c8] : memref<10x10x80xf32, #tpu.memory_space<vmem>>, vector<8x8x64xf32>
    tpu.vector_store %arg11[%c1, %c1_6, %c8], %3 {strides = array<i32>} : memref<10x10x80xf32, #tpu.memory_space<vmem>>, vector<8x8x64xf32>,
    %c0_7 = arith.constant 0 : index
    %c0_8 = arith.constant 0 : index
    %c0_9 = arith.constant 0 : index
    %5 = vector.load %arg11[%c0_7, %c0_8, %c0_9] : memref<10x10x80xf32, #tpu.memory_space<vmem>>, vector<10x8x64xf32>
    %c0_10 = arith.constant 0 : index
    %c0_11 = arith.constant 0 : index
    %c8_12 = arith.constant 8 : index
    %6 = vector.load %arg11[%c0_10, %c0_11, %c8_12] : memref<10x10x80xf32, #tpu.memory_space<vmem>>, vector<10x8x64xf32>
    %c0_13 = arith.constant 0 : index
    %c0_14 = arith.constant 0 : index
    %c16 = arith.constant 16 : index
    %7 = vector.load %arg11[%c0_13, %c0_14, %c16] : memref<10x10x80xf32, #tpu.memory_space<vmem>>, vector<10x8x64xf32>
    %c0_15 = arith.constant 0 : index
    %c1_16 = arith.constant 1 : index
    %c0_17 = arith.constant 0 : index
    %8 = vector.load %arg11[%c0_15, %c1_16, %c0_17] : memref<10x10x80xf32, #tpu.memory_space<vmem>>, vector<10x8x64xf32>
    %c0_18 = arith.constant 0 : index
    %c1_19 = arith.constant 1 : index
    %c8_20 = arith.constant 8 : index
    %9 = vector.load %arg11[%c0_18, %c1_19, %c8_20] : memref<10x10x80xf32, #tpu.memory_space<vmem>>, vector<10x8x64xf32>
    %c0_21 = arith.constant 0 : index
    %c1_22 = arith.constant 1 : index
    %c16_23 = arith.constant 16 : index
    %10 = vector.load %arg11[%c0_21, %c1_22, %c16_23] : memref<10x10x80xf32, #tpu.memory_space<vmem>>, vector<10x8x64xf32>
    %c0_24 = arith.constant 0 : index
    %c2 = arith.constant 2 : index
    %c0_25 = arith.constant 0 : index
    %11 = vector.load %arg11[%c0_24, %c2, %c0_25] : memref<10x10x80xf32, #tpu.memory_space<vmem>>, vector<10x8x64xf32>
    %c0_26 = arith.constant 0 : index
    %c2_27 = arith.constant 2 : index
    %c8_28 = arith.constant 8 : index
    %12 = vector.load %arg11[%c0_26, %c2_27, %c8_28] : memref<10x10x80xf32, #tpu.memory_space<vmem>>, vector<10x8x64xf32>
    %c0_29 = arith.constant 0 : index
    %c2_30 = arith.constant 2 : index
    %c16_31 = arith.constant 16 : index
    %13 = vector.load %arg11[%c0_29, %c2_30, %c16_31] : memref<10x10x80xf32, #tpu.memory_space<vmem>>, vector<10x8x64xf32>
    %c0_32 = arith.constant 0 : index
    %c0_33 = arith.constant 0 : index
    %c0_34 = arith.constant 0 : index
    %c0_35 = arith.constant 0 : index
    %14 = vector.load %arg2[%c0_32, %c0_33, %c0_34, %c0_35] : memref<3x3x3x64xf32, #tpu.memory_space<vmem>>, vector<3x3x3x64xf32>
    %cst_36 = arith.constant 0.000000e+00 : f32
    %15 = vector.broadcast %cst_36 : f32 to vector<8x8x64xf32>
    %16 = vector.extract_strided_slice %5 {offsets = [0, 0, 0], sizes = [8, 8, 64], strides = [1, 1, 1]} : vector<10x8x64xf32> to vector<8x8x64xf32>
    %17 = vector.extract_strided_slice %14 {offsets = [0, 0, 0, 0], sizes = [1, 1, 1, 64], strides = [1, 1, 1, 1]} : vector<3x3x3x64xf32> to vector<1x1x1x64xf32>
    %18 = vector.shape_cast %17 : vector<1x1x1x64xf32> to vector<64xf32>
    %19 = vector.shape_cast %18 : vector<64xf32> to vector<1x1x64xf32>
    %20 = vector.broadcast %19 : vector<1x1x64xf32> to vector<8x8x64xf32>
    %21 = arith.mulf %16, %20 : vector<8x8x64xf32>
    %22 = arith.addf %15, %21 : vector<8x8x64xf32>
    %23 = vector.extract_strided_slice %6 {offsets = [0, 0, 0], sizes = [8, 8, 64], strides = [1, 1, 1]} : vector<10x8x64xf32> to vector<8x8x64xf32>
    %24 = vector.extract_strided_slice %14 {offsets = [0, 0, 1, 0], sizes = [1, 1, 1, 64], strides = [1, 1, 1, 1]} : vector<3x3x3x64xf32> to vector<1x1x1x64xf32>
    %25 = vector.shape_cast %24 : vector<1x1x1x64xf32> to vector<64xf32>
    %26 = vector.shape_cast %25 : vector<64xf32> to vector<1x1x64xf32>
    %27 = vector.broadcast %26 : vector<1x1x64xf32> to vector<8x8x64xf32>
    %28 = arith.mulf %23, %27 : vector<8x8x64xf32>
    %29 = arith.addf %22, %28 : vector<8x8x64xf32>
    %30 = vector.extract_strided_slice %7 {offsets = [0, 0, 0], sizes = [8, 8, 64], strides = [1, 1, 1]} : vector<10x8x64xf32> to vector<8x8x64xf32>
    %31 = vector.extract_strided_slice %14 {offsets = [0, 0, 2, 0], sizes = [1, 1, 1, 64], strides = [1, 1, 1, 1]} : vector<3x3x3x64xf32> to vector<1x1x1x64xf32>
    %32 = vector.shape_cast %31 : vector<1x1x1x64xf32> to vector<64xf32>
    %33 = vector.shape_cast %32 : vector<64xf32> to vector<1x1x64xf32>
    %34 = vector.broadcast %33 : vector<1x1x64xf32> to vector<8x8x64xf32>
    %35 = arith.mulf %30, %34 : vector<8x8x64xf32>
    %36 = arith.addf %29, %35 : vector<8x8x64xf32>
    %37 = vector.extract_strided_slice %8 {offsets = [0, 0, 0], sizes = [8, 8, 64], strides = [1, 1, 1]} : vector<10x8x64xf32> to vector<8x8x64xf32>
    %38 = vector.extract_strided_slice %14 {offsets = [0, 1, 0, 0], sizes = [1, 1, 1, 64], strides = [1, 1, 1, 1]} : vector<3x3x3x64xf32> to vector<1x1x1x64xf32>
    %39 = vector.shape_cast %38 : vector<1x1x1x64xf32> to vector<64xf32>
    %40 = vector.shape_cast %39 : vector<64xf32> to vector<1x1x64xf32>
    %41 = vector.broadcast %40 : vector<1x1x64xf32> to vector<8x8x64xf32>
    %42 = arith.mulf %37, %41 : vector<8x8x64xf32>
    %43 = arith.addf %36, %42 : vector<8x8x64xf32>
    %44 = vector.extract_strided_slice %9 {offsets = [0, 0, 0], sizes = [8, 8, 64], strides = [1, 1, 1]} : vector<10x8x64xf32> to vector<8x8x64xf32>
    %45 = vector.extract_strided_slice %14 {offsets = [0, 1, 1, 0], sizes = [1, 1, 1, 64], strides = [1, 1, 1, 1]} : vector<3x3x3x64xf32> to vector<1x1x1x64xf32>
    %46 = vector.shape_cast %45 : vector<1x1x1x64xf32> to vector<64xf32>
    %47 = vector.shape_cast %46 : vector<64xf32> to vector<1x1x64xf32>
    %48 = vector.broadcast %47 : vector<1x1x64xf32> to vector<8x8x64xf32>
    %49 = arith.mulf %44, %48 : vector<8x8x64xf32>
    %50 = arith.addf %43, %49 : vector<8x8x64xf32>
    %51 = vector.extract_strided_slice %10 {offsets = [0, 0, 0], sizes = [8, 8, 64], strides = [1, 1, 1]} : vector<10x8x64xf32> to vector<8x8x64xf32>
    %52 = vector.extract_strided_slice %14 {offsets = [0, 1, 2, 0], sizes = [1, 1, 1, 64], strides = [1, 1, 1, 1]} : vector<3x3x3x64xf32> to vector<1x1x1x64xf32>
    %53 = vector.shape_cast %52 : vector<1x1x1x64xf32> to vector<64xf32>
    %54 = vector.shape_cast %53 : vector<64xf32> to vector<1x1x64xf32>
    %55 = vector.broadcast %54 : vector<1x1x64xf32> to vector<8x8x64xf32>
    %56 = arith.mulf %51, %55 : vector<8x8x64xf32>
    %57 = arith.addf %50, %56 : vector<8x8x64xf32>
    %58 = vector.extract_strided_slice %11 {offsets = [0, 0, 0], sizes = [8, 8, 64], strides = [1, 1, 1]} : vector<10x8x64xf32> to vector<8x8x64xf32>
    %59 = vector.extract_strided_slice %14 {offsets = [0, 2, 0, 0], sizes = [1, 1, 1, 64], strides = [1, 1, 1, 1]} : vector<3x3x3x64xf32> to vector<1x1x1x64xf32>
    %60 = vector.shape_cast %59 : vector<1x1x1x64xf32> to vector<64xf32>
    %61 = vector.shape_cast %60 : vector<64xf32> to vector<1x1x64xf32>
    %62 = vector.broadcast %61 : vector<1x1x64xf32> to vector<8x8x64xf32>
    %63 = arith.mulf %58, %62 : vector<8x8x64xf32>
    %64 = arith.addf %57, %63 : vector<8x8x64xf32>
    %65 = vector.extract_strided_slice %12 {offsets = [0, 0, 0], sizes = [8, 8, 64], strides = [1, 1, 1]} : vector<10x8x64xf32> to vector<8x8x64xf32>
    %66 = vector.extract_strided_slice %14 {offsets = [0, 2, 1, 0], sizes = [1, 1, 1, 64], strides = [1, 1, 1, 1]} : vector<3x3x3x64xf32> to vector<1x1x1x64xf32>
    %67 = vector.shape_cast %66 : vector<1x1x1x64xf32> to vector<64xf32>
    %68 = vector.shape_cast %67 : vector<64xf32> to vector<1x1x64xf32>
    %69 = vector.broadcast %68 : vector<1x1x64xf32> to vector<8x8x64xf32>
    %70 = arith.mulf %65, %69 : vector<8x8x64xf32>
    %71 = arith.addf %64, %70 : vector<8x8x64xf32>
    %72 = vector.extract_strided_slice %13 {offsets = [0, 0, 0], sizes = [8, 8, 64], strides = [1, 1, 1]} : vector<10x8x64xf32> to vector<8x8x64xf32>
    %73 = vector.extract_strided_slice %14 {offsets = [0, 2, 2, 0], sizes = [1, 1, 1, 64], strides = [1, 1, 1, 1]} : vector<3x3x3x64xf32> to vector<1x1x1x64xf32>
    %74 = vector.shape_cast %73 : vector<1x1x1x64xf32> to vector<64xf32>
    %75 = vector.shape_cast %74 : vector<64xf32> to vector<1x1x64xf32>
    %76 = vector.broadcast %75 : vector<1x1x64xf32> to vector<8x8x64xf32>
    %77 = arith.mulf %72, %76 : vector<8x8x64xf32>
    %78 = arith.addf %71, %77 : vector<8x8x64xf32>
    %79 = vector.extract_strided_slice %5 {offsets = [1, 0, 0], sizes = [8, 8, 64], strides = [1, 1, 1]} : vector<10x8x64xf32> to vector<8x8x64xf32>
    %80 = vector.extract_strided_slice %14 {offsets = [1, 0, 0, 0], sizes = [1, 1, 1, 64], strides = [1, 1, 1, 1]} : vector<3x3x3x64xf32> to vector<1x1x1x64xf32>
    %81 = vector.shape_cast %80 : vector<1x1x1x64xf32> to vector<64xf32>
    %82 = vector.shape_cast %81 : vector<64xf32> to vector<1x1x64xf32>
    %83 = vector.broadcast %82 : vector<1x1x64xf32> to vector<8x8x64xf32>
    %84 = arith.mulf %79, %83 : vector<8x8x64xf32>
    %85 = arith.addf %78, %84 : vector<8x8x64xf32>
    %86 = vector.extract_strided_slice %6 {offsets = [1, 0, 0], sizes = [8, 8, 64], strides = [1, 1, 1]} : vector<10x8x64xf32> to vector<8x8x64xf32>
    %87 = vector.extract_strided_slice %14 {offsets = [1, 0, 1, 0], sizes = [1, 1, 1, 64], strides = [1, 1, 1, 1]} : vector<3x3x3x64xf32> to vector<1x1x1x64xf32>
    %88 = vector.shape_cast %87 : vector<1x1x1x64xf32> to vector<64xf32>
    %89 = vector.shape_cast %88 : vector<64xf32> to vector<1x1x64xf32>
    %90 = vector.broadcast %89 : vector<1x1x64xf32> to vector<8x8x64xf32>
    %91 = arith.mulf %86, %90 : vector<8x8x64xf32>
    %92 = arith.addf %85, %91 : vector<8x8x64xf32>
    %93 = vector.extract_strided_slice %7 {offsets = [1, 0, 0], sizes = [8, 8, 64], strides = [1, 1, 1]} : vector<10x8x64xf32> to vector<8x8x64xf32>
    %94 = vector.extract_strided_slice %14 {offsets = [1, 0, 2, 0], sizes = [1, 1, 1, 64], strides = [1, 1, 1, 1]} : vector<3x3x3x64xf32> to vector<1x1x1x64xf32>
    %95 = vector.shape_cast %94 : vector<1x1x1x64xf32> to vector<64xf32>
    %96 = vector.shape_cast %95 : vector<64xf32> to vector<1x1x64xf32>
    %97 = vector.broadcast %96 : vector<1x1x64xf32> to vector<8x8x64xf32>
    %98 = arith.mulf %93, %97 : vector<8x8x64xf32>
    %99 = arith.addf %92, %98 : vector<8x8x64xf32>
    %100 = vector.extract_strided_slice %8 {offsets = [1, 0, 0], sizes = [8, 8, 64], strides = [1, 1, 1]} : vector<10x8x64xf32> to vector<8x8x64xf32>
    %101 = vector.extract_strided_slice %14 {offsets = [1, 1, 0, 0], sizes = [1, 1, 1, 64], strides = [1, 1, 1, 1]} : vector<3x3x3x64xf32> to vector<1x1x1x64xf32>
    %102 = vector.shape_cast %101 : vector<1x1x1x64xf32> to vector<64xf32>
    %103 = vector.shape_cast %102 : vector<64xf32> to vector<1x1x64xf32>
    %104 = vector.broadcast %103 : vector<1x1x64xf32> to vector<8x8x64xf32>
    %105 = arith.mulf %100, %104 : vector<8x8x64xf32>
    %106 = arith.addf %99, %105 : vector<8x8x64xf32>
    %107 = vector.extract_strided_slice %9 {offsets = [1, 0, 0], sizes = [8, 8, 64], strides = [1, 1, 1]} : vector<10x8x64xf32> to vector<8x8x64xf32>
    %108 = vector.extract_strided_slice %14 {offsets = [1, 1, 1, 0], sizes = [1, 1, 1, 64], strides = [1, 1, 1, 1]} : vector<3x3x3x64xf32> to vector<1x1x1x64xf32>
    %109 = vector.shape_cast %108 : vector<1x1x1x64xf32> to vector<64xf32>
    %110 = vector.shape_cast %109 : vector<64xf32> to vector<1x1x64xf32>
    %111 = vector.broadcast %110 : vector<1x1x64xf32> to vector<8x8x64xf32>
    %112 = arith.mulf %107, %111 : vector<8x8x64xf32>
    %113 = arith.addf %106, %112 : vector<8x8x64xf32>
    %114 = vector.extract_strided_slice %10 {offsets = [1, 0, 0], sizes = [8, 8, 64], strides = [1, 1, 1]} : vector<10x8x64xf32> to vector<8x8x64xf32>
    %115 = vector.extract_strided_slice %14 {offsets = [1, 1, 2, 0], sizes = [1, 1, 1, 64], strides = [1, 1, 1, 1]} : vector<3x3x3x64xf32> to vector<1x1x1x64xf32>
    %116 = vector.shape_cast %115 : vector<1x1x1x64xf32> to vector<64xf32>
    %117 = vector.shape_cast %116 : vector<64xf32> to vector<1x1x64xf32>
    %118 = vector.broadcast %117 : vector<1x1x64xf32> to vector<8x8x64xf32>
    %119 = arith.mulf %114, %118 : vector<8x8x64xf32>
    %120 = arith.addf %113, %119 : vector<8x8x64xf32>
    %121 = vector.extract_strided_slice %11 {offsets = [1, 0, 0], sizes = [8, 8, 64], strides = [1, 1, 1]} : vector<10x8x64xf32> to vector<8x8x64xf32>
    %122 = vector.extract_strided_slice %14 {offsets = [1, 2, 0, 0], sizes = [1, 1, 1, 64], strides = [1, 1, 1, 1]} : vector<3x3x3x64xf32> to vector<1x1x1x64xf32>
    %123 = vector.shape_cast %122 : vector<1x1x1x64xf32> to vector<64xf32>
    %124 = vector.shape_cast %123 : vector<64xf32> to vector<1x1x64xf32>
    %125 = vector.broadcast %124 : vector<1x1x64xf32> to vector<8x8x64xf32>
    %126 = arith.mulf %121, %125 : vector<8x8x64xf32>
    %127 = arith.addf %120, %126 : vector<8x8x64xf32>
    %128 = vector.extract_strided_slice %12 {offsets = [1, 0, 0], sizes = [8, 8, 64], strides = [1, 1, 1]} : vector<10x8x64xf32> to vector<8x8x64xf32>
    %129 = vector.extract_strided_slice %14 {offsets = [1, 2, 1, 0], sizes = [1, 1, 1, 64], strides = [1, 1, 1, 1]} : vector<3x3x3x64xf32> to vector<1x1x1x64xf32>
    %130 = vector.shape_cast %129 : vector<1x1x1x64xf32> to vector<64xf32>
    %131 = vector.shape_cast %130 : vector<64xf32> to vector<1x1x64xf32>
    %132 = vector.broadcast %131 : vector<1x1x64xf32> to vector<8x8x64xf32>
    %133 = arith.mulf %128, %132 : vector<8x8x64xf32>
    %134 = arith.addf %127, %133 : vector<8x8x64xf32>
    %135 = vector.extract_strided_slice %13 {offsets = [1, 0, 0], sizes = [8, 8, 64], strides = [1, 1, 1]} : vector<10x8x64xf32> to vector<8x8x64xf32>
    %136 = vector.extract_strided_slice %14 {offsets = [1, 2, 2, 0], sizes = [1, 1, 1, 64], strides = [1, 1, 1, 1]} : vector<3x3x3x64xf32> to vector<1x1x1x64xf32>
    %137 = vector.shape_cast %136 : vector<1x1x1x64xf32> to vector<64xf32>
    %138 = vector.shape_cast %137 : vector<64xf32> to vector<1x1x64xf32>
    %139 = vector.broadcast %138 : vector<1x1x64xf32> to vector<8x8x64xf32>
    %140 = arith.mulf %135, %139 : vector<8x8x64xf32>
    %141 = arith.addf %134, %140 : vector<8x8x64xf32>
    %142 = vector.extract_strided_slice %5 {offsets = [2, 0, 0], sizes = [8, 8, 64], strides = [1, 1, 1]} : vector<10x8x64xf32> to vector<8x8x64xf32>
    %143 = vector.extract_strided_slice %14 {offsets = [2, 0, 0, 0], sizes = [1, 1, 1, 64], strides = [1, 1, 1, 1]} : vector<3x3x3x64xf32> to vector<1x1x1x64xf32>
    %144 = vector.shape_cast %143 : vector<1x1x1x64xf32> to vector<64xf32>
    %145 = vector.shape_cast %144 : vector<64xf32> to vector<1x1x64xf32>
    %146 = vector.broadcast %145 : vector<1x1x64xf32> to vector<8x8x64xf32>
    %147 = arith.mulf %142, %146 : vector<8x8x64xf32>
    %148 = arith.addf %141, %147 : vector<8x8x64xf32>
    %149 = vector.extract_strided_slice %6 {offsets = [2, 0, 0], sizes = [8, 8, 64], strides = [1, 1, 1]} : vector<10x8x64xf32> to vector<8x8x64xf32>
    %150 = vector.extract_strided_slice %14 {offsets = [2, 0, 1, 0], sizes = [1, 1, 1, 64], strides = [1, 1, 1, 1]} : vector<3x3x3x64xf32> to vector<1x1x1x64xf32>
    %151 = vector.shape_cast %150 : vector<1x1x1x64xf32> to vector<64xf32>
    %152 = vector.shape_cast %151 : vector<64xf32> to vector<1x1x64xf32>
    %153 = vector.broadcast %152 : vector<1x1x64xf32> to vector<8x8x64xf32>
    %154 = arith.mulf %149, %153 : vector<8x8x64xf32>
    %155 = arith.addf %148, %154 : vector<8x8x64xf32>
    %156 = vector.extract_strided_slice %7 {offsets = [2, 0, 0], sizes = [8, 8, 64], strides = [1, 1, 1]} : vector<10x8x64xf32> to vector<8x8x64xf32>
    %157 = vector.extract_strided_slice %14 {offsets = [2, 0, 2, 0], sizes = [1, 1, 1, 64], strides = [1, 1, 1, 1]} : vector<3x3x3x64xf32> to vector<1x1x1x64xf32>
    %158 = vector.shape_cast %157 : vector<1x1x1x64xf32> to vector<64xf32>
    %159 = vector.shape_cast %158 : vector<64xf32> to vector<1x1x64xf32>
    %160 = vector.broadcast %159 : vector<1x1x64xf32> to vector<8x8x64xf32>
    %161 = arith.mulf %156, %160 : vector<8x8x64xf32>
    %162 = arith.addf %155, %161 : vector<8x8x64xf32>
    %163 = vector.extract_strided_slice %8 {offsets = [2, 0, 0], sizes = [8, 8, 64], strides = [1, 1, 1]} : vector<10x8x64xf32> to vector<8x8x64xf32>
    %164 = vector.extract_strided_slice %14 {offsets = [2, 1, 0, 0], sizes = [1, 1, 1, 64], strides = [1, 1, 1, 1]} : vector<3x3x3x64xf32> to vector<1x1x1x64xf32>
    %165 = vector.shape_cast %164 : vector<1x1x1x64xf32> to vector<64xf32>
    %166 = vector.shape_cast %165 : vector<64xf32> to vector<1x1x64xf32>
    %167 = vector.broadcast %166 : vector<1x1x64xf32> to vector<8x8x64xf32>
    %168 = arith.mulf %163, %167 : vector<8x8x64xf32>
    %169 = arith.addf %162, %168 : vector<8x8x64xf32>
    %170 = vector.extract_strided_slice %9 {offsets = [2, 0, 0], sizes = [8, 8, 64], strides = [1, 1, 1]} : vector<10x8x64xf32> to vector<8x8x64xf32>
    %171 = vector.extract_strided_slice %14 {offsets = [2, 1, 1, 0], sizes = [1, 1, 1, 64], strides = [1, 1, 1, 1]} : vector<3x3x3x64xf32> to vector<1x1x1x64xf32>
    %172 = vector.shape_cast %171 : vector<1x1x1x64xf32> to vector<64xf32>
    %173 = vector.shape_cast %172 : vector<64xf32> to vector<1x1x64xf32>
    %174 = vector.broadcast %173 : vector<1x1x64xf32> to vector<8x8x64xf32>
    %175 = arith.mulf %170, %174 : vector<8x8x64xf32>
    %176 = arith.addf %169, %175 : vector<8x8x64xf32>
    %177 = vector.extract_strided_slice %10 {offsets = [2, 0, 0], sizes = [8, 8, 64], strides = [1, 1, 1]} : vector<10x8x64xf32> to vector<8x8x64xf32>
    %178 = vector.extract_strided_slice %14 {offsets = [2, 1, 2, 0], sizes = [1, 1, 1, 64], strides = [1, 1, 1, 1]} : vector<3x3x3x64xf32> to vector<1x1x1x64xf32>
    %179 = vector.shape_cast %178 : vector<1x1x1x64xf32> to vector<64xf32>
    %180 = vector.shape_cast %179 : vector<64xf32> to vector<1x1x64xf32>
    %181 = vector.broadcast %180 : vector<1x1x64xf32> to vector<8x8x64xf32>
    %182 = arith.mulf %177, %181 : vector<8x8x64xf32>
    %183 = arith.addf %176, %182 : vector<8x8x64xf32>
    %184 = vector.extract_strided_slice %11 {offsets = [2, 0, 0], sizes = [8, 8, 64], strides = [1, 1, 1]} : vector<10x8x64xf32> to vector<8x8x64xf32>
    %185 = vector.extract_strided_slice %14 {offsets = [2, 2, 0, 0], sizes = [1, 1, 1, 64], strides = [1, 1, 1, 1]} : vector<3x3x3x64xf32> to vector<1x1x1x64xf32>
    %186 = vector.shape_cast %185 : vector<1x1x1x64xf32> to vector<64xf32>
    %187 = vector.shape_cast %186 : vector<64xf32> to vector<1x1x64xf32>
    %188 = vector.broadcast %187 : vector<1x1x64xf32> to vector<8x8x64xf32>
    %189 = arith.mulf %184, %188 : vector<8x8x64xf32>
    %190 = arith.addf %183, %189 : vector<8x8x64xf32>
    %191 = vector.extract_strided_slice %12 {offsets = [2, 0, 0], sizes = [8, 8, 64], strides = [1, 1, 1]} : vector<10x8x64xf32> to vector<8x8x64xf32>
    %192 = vector.extract_strided_slice %14 {offsets = [2, 2, 1, 0], sizes = [1, 1, 1, 64], strides = [1, 1, 1, 1]} : vector<3x3x3x64xf32> to vector<1x1x1x64xf32>
    %193 = vector.shape_cast %192 : vector<1x1x1x64xf32> to vector<64xf32>
    %194 = vector.shape_cast %193 : vector<64xf32> to vector<1x1x64xf32>
    %195 = vector.broadcast %194 : vector<1x1x64xf32> to vector<8x8x64xf32>
    %196 = arith.mulf %191, %195 : vector<8x8x64xf32>
    %197 = arith.addf %190, %196 : vector<8x8x64xf32>
    %198 = vector.extract_strided_slice %13 {offsets = [2, 0, 0], sizes = [8, 8, 64], strides = [1, 1, 1]} : vector<10x8x64xf32> to vector<8x8x64xf32>
    %199 = vector.extract_strided_slice %14 {offsets = [2, 2, 2, 0], sizes = [1, 1, 1, 64], strides = [1, 1, 1, 1]} : vector<3x3x3x64xf32> to vector<1x1x1x64xf32>
    %200 = vector.shape_cast %199 : vector<1x1x1x64xf32> to vector<64xf32>
    %201 = vector.shape_cast %200 : vector<64xf32> to vector<1x1x64xf32>
    %202 = vector.broadcast %201 : vector<1x1x64xf32> to vector<8x8x64xf32>
    %203 = arith.mulf %198, %202 : vector<8x8x64xf32>
    %204 = arith.addf %197, %203 : vector<8x8x64xf32>
    %c0_37 = arith.constant 0 : index
    %c0_38 = arith.constant 0 : index
    %205 = vector.load %arg3[%c0_37, %c0_38] : memref<1x64xf32, #tpu.memory_space<vmem>>, vector<1x64xf32>
    %206 = vector.shape_cast %205 : vector<1x64xf32> to vector<1x1x64xf32>
    %207 = vector.broadcast %206 : vector<1x1x64xf32> to vector<8x8x64xf32>
    %208 = arith.addf %204, %207 : vector<8x8x64xf32>
    %209 = vector.shape_cast %208 : vector<8x8x64xf32> to vector<64x64xf32>
    %c0_39 = arith.constant 0 : index
    %c0_40 = arith.constant 0 : index
    %210 = vector.load %arg6[%c0_39, %c0_40] : memref<64x4xf32, #tpu.memory_space<vmem>>, vector<64x4xf32>
    %c0_41 = arith.constant 0 : index
    %c0_42 = arith.constant 0 : index
    %211 = vector.load %arg7[%c0_41, %c0_42] : memref<4x64xf32, #tpu.memory_space<vmem>>, vector<4x64xf32>
    %cst_43 = arith.constant dense<0.000000e+00> : vector<64xf32>
    %212 = vector.multi_reduction <add>, %209, %cst_43 [0] : vector<64x64xf32> to vector<64xf32>
    %213 = vector.shape_cast %212 : vector<64xf32> to vector<1x64xf32>
    %cst_44 = arith.constant dense<0.000000e+00> : vector<1x4xf32>
    %214 = tpu.matmul %213, %210, %cst_44 {dimension_numbers = #tpu.dot_dimension_numbers<[1], [0], [0], [1], [0, 0, 1, 1], [], []>} : vector<1x64xf32>, vector<64x4xf32>, vector<1x4xf32> -> vector<1x4xf32>
    %cst_45 = arith.constant 9.765625E-4 : f32
    %215 = vector.broadcast %cst_45 : f32 to vector<1x4xf32>
    %216 = arith.mulf %214, %215 : vector<1x4xf32>
    %cst_46 = arith.constant dense<0.000000e+00> : vector<1x64xf32>
    %217 = tpu.matmul %216, %211, %cst_46 {dimension_numbers = #tpu.dot_dimension_numbers<[1], [0], [0], [1], [0, 0, 1, 1], [], []>} : vector<1x4xf32>, vector<4x64xf32>, vector<1x64xf32> -> vector<1x64xf32>
    %218 = vector.broadcast %217 : vector<1x64xf32> to vector<64x64xf32>
    %219 = arith.subf %209, %218 : vector<64x64xf32>
    %220 = arith.mulf %219, %219 : vector<64x64xf32>
    %cst_47 = arith.constant dense<0.000000e+00> : vector<64xf32>
    %221 = vector.multi_reduction <add>, %220, %cst_47 [0] : vector<64x64xf32> to vector<64xf32>
    %222 = vector.shape_cast %221 : vector<64xf32> to vector<1x64xf32>
    %cst_48 = arith.constant dense<0.000000e+00> : vector<1x4xf32>
    %223 = tpu.matmul %222, %210, %cst_48 {dimension_numbers = #tpu.dot_dimension_numbers<[1], [0], [0], [1], [0, 0, 1, 1], [], []>} : vector<1x64xf32>, vector<64x4xf32>, vector<1x4xf32> -> vector<1x4xf32>
    %cst_49 = arith.constant 9.765625E-4 : f32
    %224 = vector.broadcast %cst_49 : f32 to vector<1x4xf32>
    %225 = arith.mulf %223, %224 : vector<1x4xf32>
    %cst_50 = arith.constant 9.99999974E-6 : f32
    %226 = vector.broadcast %cst_50 : f32 to vector<1x4xf32>
    %227 = arith.addf %225, %226 : vector<1x4xf32>
    %228 = math.rsqrt %227 : vector<1x4xf32>
    %cst_51 = arith.constant dense<0.000000e+00> : vector<1x64xf32>
    %229 = tpu.matmul %228, %211, %cst_51 {dimension_numbers = #tpu.dot_dimension_numbers<[1], [0], [0], [1], [0, 0, 1, 1], [], []>} : vector<1x4xf32>, vector<4x64xf32>, vector<1x64xf32> -> vector<1x64xf32>
    %230 = vector.broadcast %229 : vector<1x64xf32> to vector<64x64xf32>
    %231 = arith.mulf %219, %230 : vector<64x64xf32>
    %c0_52 = arith.constant 0 : index
    %c0_53 = arith.constant 0 : index
    %232 = vector.load %arg4[%c0_52, %c0_53] : memref<1x64xf32, #tpu.memory_space<vmem>>, vector<1x64xf32>
    %233 = vector.broadcast %232 : vector<1x64xf32> to vector<64x64xf32>
    %234 = arith.mulf %231, %233 : vector<64x64xf32>
    %c0_54 = arith.constant 0 : index
    %c0_55 = arith.constant 0 : index
    %235 = vector.load %arg5[%c0_54, %c0_55] : memref<1x64xf32, #tpu.memory_space<vmem>>, vector<1x64xf32>
    %236 = vector.broadcast %235 : vector<1x64xf32> to vector<64x64xf32>
    %237 = arith.addf %234, %236 : vector<64x64xf32>
    %238 = arith.truncf %237 : vector<64x64xf32> to vector<64x64xbf16>
    %c0_56 = arith.constant 0 : index
    %c0_57 = arith.constant 0 : index
    %239 = vector.load %arg8[%c0_56, %c0_57] : memref<64x128xbf16, #tpu.memory_space<vmem>>, vector<64x128xbf16>
    %cst_58 = arith.constant dense<0.000000e+00> : vector<64x128xf32>
    %240 = tpu.matmul %238, %239, %cst_58 {dimension_numbers = #tpu.dot_dimension_numbers<[1], [0], [0], [1], [0, 0, 1, 1], [], []>} : vector<64x64xbf16>, vector<64x128xbf16>, vector<64x128xf32> -> vector<64x128xf32>
    %c0_59 = arith.constant 0 : index
    %c0_60 = arith.constant 0 : index
    %241 = vector.load %arg9[%c0_59, %c0_60] : memref<1x128xf32, #tpu.memory_space<vmem>>, vector<1x128xf32>
    %242 = vector.broadcast %241 : vector<1x128xf32> to vector<64x128xf32>
    %243 = arith.addf %240, %242 : vector<64x128xf32>
    %c0_61 = arith.constant 0 : index
    %c0_62 = arith.constant 0 : index
    %c0_63 = arith.constant 0 : index
    %244 = vector.load %arg10[%c0_61, %c0_62, %c0_63] : memref<1x64x128xf32, #tpu.memory_space<vmem>>, vector<1x64x128xf32>
    %245 = vector.shape_cast %244 : vector<1x64x128xf32> to vector<64x128xf32>
    %246 = vector.shape_cast %243 : vector<64x128xf32> to vector<1x64x128xf32>
    tpu.vector_store %arg10[%c0_61, %c0_62, %c0_63], %246 {strides = array<i32>} : memref<1x64x128xf32, #tpu.memory_space<vmem>>, vector<1x64x128xf32>,
    return
  }
  func.func @transform_0(%arg0: i32) -> (i32, i32, i32, i32) {
    %c0_i32 = arith.constant 0 : i32
    %c0_i32_0 = arith.constant 0 : i32
    %c0_i32_1 = arith.constant 0 : i32
    %c0_i32_2 = arith.constant 0 : i32
    return %arg0, %c0_i32, %c0_i32_0, %c0_i32_1 : i32, i32, i32, i32
  }
  func.func @transform_1(%arg0: i32) -> (i32, i32, i32, i32) {
    %c0_i32 = arith.constant 0 : i32
    %c0_i32_0 = arith.constant 0 : i32
    %c0_i32_1 = arith.constant 0 : i32
    %c0_i32_2 = arith.constant 0 : i32
    %c0_i32_3 = arith.constant 0 : i32
    return %c0_i32, %c0_i32_0, %c0_i32_1, %c0_i32_2 : i32, i32, i32, i32
  }
  func.func @transform_2(%arg0: i32) -> (i32, i32) {
    %c0_i32 = arith.constant 0 : i32
    %c0_i32_0 = arith.constant 0 : i32
    %c0_i32_1 = arith.constant 0 : i32
    return %c0_i32, %c0_i32_0 : i32, i32
  }
  func.func @transform_3(%arg0: i32) -> (i32, i32) {
    %c0_i32 = arith.constant 0 : i32
    %c0_i32_0 = arith.constant 0 : i32
    %c0_i32_1 = arith.constant 0 : i32
    return %c0_i32, %c0_i32_0 : i32, i32
  }
  func.func @transform_4(%arg0: i32) -> (i32, i32) {
    %c0_i32 = arith.constant 0 : i32
    %c0_i32_0 = arith.constant 0 : i32
    %c0_i32_1 = arith.constant 0 : i32
    return %c0_i32, %c0_i32_0 : i32, i32
  }
  func.func @transform_5(%arg0: i32) -> (i32, i32) {
    %c0_i32 = arith.constant 0 : i32
    %c0_i32_0 = arith.constant 0 : i32
    %c0_i32_1 = arith.constant 0 : i32
    return %c0_i32, %c0_i32_0 : i32, i32
  }
  func.func @transform_6(%arg0: i32) -> (i32, i32) {
    %c0_i32 = arith.constant 0 : i32
    %c0_i32_0 = arith.constant 0 : i32
    %c0_i32_1 = arith.constant 0 : i32
    return %c0_i32, %c0_i32_0 : i32, i32
  }
  func.func @transform_7(%arg0: i32) -> (i32, i32) {
    %c0_i32 = arith.constant 0 : i32
    %c0_i32_0 = arith.constant 0 : i32
    %c0_i32_1 = arith.constant 0 : i32
    return %c0_i32, %c0_i32_0 : i32, i32
  }
  func.func @transform_8(%arg0: i32) -> (i32, i32) {
    %c0_i32 = arith.constant 0 : i32
    %c0_i32_0 = arith.constant 0 : i32
    %c0_i32_1 = arith.constant 0 : i32
    return %c0_i32, %c0_i32_0 : i32, i32
  }
  func.func @transform_9(%arg0: i32) -> (i32, i32, i32) {
    %c0_i32 = arith.constant 0 : i32
    %c0_i32_0 = arith.constant 0 : i32
    %c0_i32_1 = arith.constant 0 : i32
    return %arg0, %c0_i32, %c0_i32_0 : i32, i32, i32
  }
}

</mosaic_0001>

<llo_original>
// kernel: tile.30
$region0: #{tile.30}
  %s0 = inlined_call_operand.vmem [shape: f32[3,3,3,8,8], index: 0, kind: input, shape index: {}]
  %s1 = inlined_call_operand.vmem [shape: f32[3,3,3,64], index: 1, kind: output, shape index: {}]
  $region1: #{tile.30} parent=0
    #allocation0 [shape = 'u8[36864]{0}', space=vmem, size = 0x9000, scoped, tag = 'scoped mem for output reshape']
    %v2 = vld [vmem:[%s0] ss:$8 sm:$0xf]
    %v3 = vld [vmem:[%s0] ss:$8 sm:$0xf0]
    %vm4 = vcmask 1047556
    %v5 = vsel %vm4, %v3, %v2
    %vm6 = vcmask 64512
    %7 = vst.msk [vmem:[#allocation0] sm:$0x7] %vm6, %v5
    %s8 = scalar_lea.vmem [#allocation0], 5
    %9 = vst.msk [vmem:[%s8] sm:$0x38] %vm6, %v5
    %s10 = scalar_lea.vmem [#allocation0], 10
    %11 = vst.msk [vmem:[%s10] sm:$0xc0] %vm6, %v5
    %s12 = scalar_lea.vmem %s0, 64
    %v13 = vld [vmem:[%s12] ss:$8 sm:$0xf]
    %s14 = scalar_lea.vmem %s0, 64
    %v15 = vld [vmem:[%s14] ss:$8 sm:$0xf0]
    %vm16 = vcmask 1047556
    %v17 = vsel %vm16, %v15, %v13
    %vm18 = vcmask 64512
    %s19 = scalar_lea.vmem [#allocation0], 18
    %20 = vst.msk [vmem:[%s19] ss:$6 sm:$0x3] %vm18, %v17
    %s21 = scalar_lea.vmem [#allocation0], 23
    %22 = vst.msk [vmem:[%s21] sm:$0xc] %vm18, %v17
    %s23 = scalar_lea.vmem [#allocation0], 28
    %24 = vst.msk [vmem:[%s23] sm:$0x70] %vm18, %v17
    %s25 = scalar_lea.vmem [#allocation0], 33
    %26 = vst.msk [vmem:[%s25] sm:$0x80] %vm18, %v17
    %s27 = scalar_lea.vmem %s0, 128
    %v28 = vld [vmem:[%s27] ss:$8 sm:$0xf]
    %s29 = scalar_lea.vmem %s0, 128
    %v30 = vld [vmem:[%s29] ss:$8 sm:$0xf0]
    %vm31 = vcmask 1047556
    %v32 = vsel %vm31, %v30, %v28
    %vm33 = vcmask 64512
    %s34 = scalar_lea.vmem [#allocation0], 41
    %35 = vst.msk [vmem:[%s34] sm:$0x3] %vm33, %v32
    %s36 = scalar_lea.vmem [#allocation0], 46
    %37 = vst.msk [vmem:[%s36] sm:$0x1c] %vm33, %v32
    %s38 = scalar_lea.vmem [#allocation0], 51
    %39 = vst.msk [vmem:[%s38] sm:$0xe0] %vm33, %v32
    %s40 = scalar_lea.vmem %s0, 192
    %v41 = vld [vmem:[%s40] ss:$8 sm:$0x7]
    %vm42 = vcmask 64512
    %s43 = scalar_lea.vmem [#allocation0], 64
    %44 = vst.msk [vmem:[%s43] sm:$0x7] %vm42, %v41
    %s45 = scalar_lea.vmem %s0, 7
    %v46 = vld [vmem:[%s45] ss:$8 sm:$0xf]
    %s47 = scalar_lea.vmem %s0, 7
    %v48 = vld [vmem:[%s47] ss:$8 sm:$0xf0]
    %vm49 = vcmask 1047556
    %v50 = vsel %vm49, %v48, %v46
    %51 = vrot.lane.b32.xlu0 %v50, 56
    %v52 = vpop.permute.xlu0 %51
    %vm53 = vcmask 523712
    %54 = vst.msk [vmem:[#allocation0] sm:$0x7] %vm53, %v52
    %s55 = scalar_lea.vmem [#allocation0], 5
    %56 = vst.msk [vmem:[%s55] sm:$0x38] %vm53, %v52
    %s57 = scalar_lea.vmem [#allocation0], 10
    %58 = vst.msk [vmem:[%s57] sm:$0xc0] %vm53, %v52
    %s59 = scalar_lea.vmem %s0, 103
    %v60 = vld [vmem:[%s59] ss:$8 sm:$0xf]
    %s61 = scalar_lea.vmem %s0, 103
    %v62 = vld [vmem:[%s61] ss:$8 sm:$0xf0]
    %vm63 = vcmask 1047556
    %v64 = vsel %vm63, %v62, %v60
    %65 = vrot.lane.b32.xlu0 %v64, 56
    %v66 = vpop.permute.xlu0 %65
    %vm67 = vcmask 523712
    %s68 = scalar_lea.vmem [#allocation0], 32
    %69 = vst.msk [vmem:[%s68] sm:$0x7] %vm67, %v66
    %s70 = scalar_lea.vmem [#allocation0], 37
    %71 = vst.msk [vmem:[%s70] sm:$0x38] %vm67, %v66
    %s72 = scalar_lea.vmem [#allocation0], 42
    %73 = vst.msk [vmem:[%s72] sm:$0xc0] %vm67, %v66
    %s74 = scalar_lea.vmem %s0, 199
    %v75 = vld [vmem:[%s74] ss:$8 sm:$0x7]
    %s76 = scalar_lea.vmem %s0, 47
    %v77 = vld [vmem:[%s76] ss:$8 sm:$0x78]
    %vm78 = vcmask 1046531
    %v79 = vsel %vm78, %v77, %v75
    %s80 = scalar_lea.vmem %s0, 160
    %v81 = vld [vmem:[%s80] sm:$0x80]
    %vm82 = vcmask 1047559
    %v83 = vsel %vm82, %v81, %v79
    %84 = vrot.lane.b32.xlu0 %v83, 56
    %v85 = vpop.permute.xlu0 %84
    %vm86 = vcmask 523712
    %s87 = scalar_lea.vmem [#allocation0], 64
    %88 = vst.msk [vmem:[%s87] sm:$0x7] %vm86, %v85
    %89 = vst.msk [vmem:[#allocation0] ss:$6 sm:$0x18] %vm86, %v85
    %s90 = scalar_lea.vmem [#allocation0], 20
    %91 = vst.msk [vmem:[%s90] sm:$0x60] %vm86, %v85
    %s92 = scalar_lea.vmem [#allocation0], 43
    %93 = vst.msk [vmem:[%s92] sm:$0x80] %vm86, %v85
    %s94 = scalar_lea.vmem %s0, 175
    %v95 = vld [vmem:[%s94] ss:$8 sm:$0x7]
    %96 = vrot.lane.b32.xlu0 %v95, 56
    %v97 = vpop.permute.xlu0 %96
    %vm98 = vcmask 523712
    %s99 = scalar_lea.vmem [#allocation0], 56
    %100 = vst.msk [vmem:[%s99] sm:$0x7] %vm98, %v97
    %s101 = scalar_lea.vmem %s0, 6
    %v102 = vld [vmem:[%s101] ss:$8 sm:$0xf]
    %s103 = scalar_lea.vmem %s0, 6
    %v104 = vld [vmem:[%s103] ss:$8 sm:$0xf0]
    %vm105 = vcmask 1047556
    %v106 = vsel %vm105, %v104, %v102
    %107 = vrot.lane.b32.xlu0 %v106, 48
    %v108 = vpop.permute.xlu0 %107
    %vm109 = vcmask 458112
    %110 = vst.msk [vmem:[#allocation0] sm:$0x7] %vm109, %v108
    %s111 = scalar_lea.vmem [#allocation0], 5
    %112 = vst.msk [vmem:[%s111] sm:$0x38] %vm109, %v108
    %s113 = scalar_lea.vmem [#allocation0], 10
    %114 = vst.msk [vmem:[%s113] sm:$0xc0] %vm109, %v108
    %s115 = scalar_lea.vmem %s0, 102
    %v116 = vld [vmem:[%s115] ss:$8 sm:$0xf]
    %s117 = scalar_lea.vmem %s0, 102
    %v118 = vld [vmem:[%s117] ss:$8 sm:$0xf0]
    %vm119 = vcmask 1047556
    %v120 = vsel %vm119, %v118, %v116
    %121 = vrot.lane.b32.xlu0 %v120, 48
    %v122 = vpop.permute.xlu0 %121
    %vm123 = vcmask 458112
    %s124 = scalar_lea.vmem [#allocation0], 32
    %125 = vst.msk [vmem:[%s124] sm:$0x7] %vm123, %v122
    %s126 = scalar_lea.vmem [#allocation0], 37
    %127 = vst.msk [vmem:[%s126] sm:$0x38] %vm123, %v122
    %s128 = scalar_lea.vmem [#allocation0], 42
    %129 = vst.msk [vmem:[%s128] sm:$0xc0] %vm123, %v122
    %s130 = scalar_lea.vmem %s0, 198
    %v131 = vld [vmem:[%s130] ss:$8 sm:$0x7]
    %s132 = scalar_lea.vmem %s0, 46
    %v133 = vld [vmem:[%s132] ss:$8 sm:$0x78]
    %vm134 = vcmask 1046531
    %v135 = vsel %vm134, %v133, %v131
    %s136 = scalar_lea.vmem %s0, 159
    %v137 = vld [vmem:[%s136] sm:$0x80]
    %vm138 = vcmask 1047559
    %v139 = vsel %vm138, %v137, %v135
    %140 = vrot.lane.b32.xlu0 %v139, 48
    %v141 = vpop.permute.xlu0 %140
    %vm142 = vcmask 458112
    %s143 = scalar_lea.vmem [#allocation0], 64
    %144 = vst.msk [vmem:[%s143] sm:$0x7] %vm142, %v141
    %145 = vst.msk [vmem:[#allocation0] ss:$6 sm:$0x18] %vm142, %v141
    %s146 = scalar_lea.vmem [#allocation0], 20
    %147 = vst.msk [vmem:[%s146] sm:$0x60] %vm142, %v141
    %s148 = scalar_lea.vmem [#allocation0], 43
    %149 = vst.msk [vmem:[%s148] sm:$0x80] %vm142, %v141
    %s150 = scalar_lea.vmem %s0, 174
    %v151 = vld [vmem:[%s150] ss:$8 sm:$0x7]
    %152 = vrot.lane.b32.xlu0 %v151, 48
    %v153 = vpop.permute.xlu0 %152
    %vm154 = vcmask 458112
    %s155 = scalar_lea.vmem [#allocation0], 56
    %156 = vst.msk [vmem:[%s155] sm:$0x7] %vm154, %v153
    %s157 = scalar_lea.vmem %s0, 5
    %v158 = vld [vmem:[%s157] ss:$8 sm:$0xf]
    %s159 = scalar_lea.vmem %s0, 5
    %v160 = vld [vmem:[%s159] ss:$8 sm:$0xf0]
    %vm161 = vcmask 1047556
    %v162 = vsel %vm161, %v160, %v158
    %163 = vrot.lane.b32.xlu0 %v162, 40
    %v164 = vpop.permute.xlu0 %163
    %vm165 = vcmask 392512
    %166 = vst.msk [vmem:[#allocation0] sm:$0x7] %vm165, %v164
    %s167 = scalar_lea.vmem [#allocation0], 5
    %168 = vst.msk [vmem:[%s167] sm:$0x38] %vm165, %v164
    %s169 = scalar_lea.vmem [#allocation0], 10
    %170 = vst.msk [vmem:[%s169] sm:$0xc0] %vm165, %v164
    %s171 = scalar_lea.vmem %s0, 101
    %v172 = vld [vmem:[%s171] ss:$8 sm:$0xf]
    %s173 = scalar_lea.vmem %s0, 101
    %v174 = vld [vmem:[%s173] ss:$8 sm:$0xf0]
    %vm175 = vcmask 1047556
    %v176 = vsel %vm175, %v174, %v172
    %177 = vrot.lane.b32.xlu0 %v176, 40
    %v178 = vpop.permute.xlu0 %177
    %vm179 = vcmask 392512
    %s180 = scalar_lea.vmem [#allocation0], 32
    %181 = vst.msk [vmem:[%s180] sm:$0x7] %vm179, %v178
    %s182 = scalar_lea.vmem [#allocation0], 37
    %183 = vst.msk [vmem:[%s182] sm:$0x38] %vm179, %v178
    %s184 = scalar_lea.vmem [#allocation0], 42
    %185 = vst.msk [vmem:[%s184] sm:$0xc0] %vm179, %v178
    %s186 = scalar_lea.vmem %s0, 197
    %v187 = vld [vmem:[%s186] ss:$8 sm:$0x7]
    %s188 = scalar_lea.vmem %s0, 45
    %v189 = vld [vmem:[%s188] ss:$8 sm:$0x78]
    %vm190 = vcmask 1046531
    %v191 = vsel %vm190, %v189, %v187
    %s192 = scalar_lea.vmem %s0, 158
    %v193 = vld [vmem:[%s192] sm:$0x80]
    %vm194 = vcmask 1047559
    %v195 = vsel %vm194, %v193, %v191
    %196 = vrot.lane.b32.xlu0 %v195, 40
    %v197 = vpop.permute.xlu0 %196
    %vm198 = vcmask 392512
    %s199 = scalar_lea.vmem [#allocation0], 64
    %200 = vst.msk [vmem:[%s199] sm:$0x7] %vm198, %v197
    %201 = vst.msk [vmem:[#allocation0] ss:$6 sm:$0x18] %vm198, %v197
    %s202 = scalar_lea.vmem [#allocation0], 20
    %203 = vst.msk [vmem:[%s202] sm:$0x60] %vm198, %v197
    %s204 = scalar_lea.vmem [#allocation0], 43
    %205 = vst.msk [vmem:[%s204] sm:$0x80] %vm198, %v197
    %s206 = scalar_lea.vmem %s0, 173
    %v207 = vld [vmem:[%s206] ss:$8 sm:$0x7]
    %208 = vrot.lane.b32.xlu0 %v207, 40
    %v209 = vpop.permute.xlu0 %208
    %vm210 = vcmask 392512
    %s211 = scalar_lea.vmem [#allocation0], 56
    %212 = vst.msk [vmem:[%s211] sm:$0x7] %vm210, %v209
    %s213 = scalar_lea.vmem %s0, 4
    %v214 = vld [vmem:[%s213] ss:$8 sm:$0xf]
    %s215 = scalar_lea.vmem %s0, 4
    %v216 = vld [vmem:[%s215] ss:$8 sm:$0xf0]
    %vm217 = vcmask 1047556
    %v218 = vsel %vm217, %v216, %v214
    %219 = vrot.lane.b32.xlu0 %v218, 32
    %v220 = vpop.permute.xlu0 %219
    %vm221 = vcmask 326912
    %222 = vst.msk [vmem:[#allocation0] sm:$0x7] %vm221, %v220
    %s223 = scalar_lea.vmem [#allocation0], 5
    %224 = vst.msk [vmem:[%s223] sm:$0x38] %vm221, %v220
    %s225 = scalar_lea.vmem [#allocation0], 10
    %226 = vst.msk [vmem:[%s225] sm:$0xc0] %vm221, %v220
    %s227 = scalar_lea.vmem %s0, 100
    %v228 = vld [vmem:[%s227] ss:$8 sm:$0xf]
    %s229 = scalar_lea.vmem %s0, 100
    %v230 = vld [vmem:[%s229] ss:$8 sm:$0xf0]
    %vm231 = vcmask 1047556
    %v232 = vsel %vm231, %v230, %v228
    %233 = vrot.lane.b32.xlu0 %v232, 32
    %v234 = vpop.permute.xlu0 %233
    %vm235 = vcmask 326912
    %s236 = scalar_lea.vmem [#allocation0], 32
    %237 = vst.msk [vmem:[%s236] sm:$0x7] %vm235, %v234
    %s238 = scalar_lea.vmem [#allocation0], 37
    %239 = vst.msk [vmem:[%s238] sm:$0x38] %vm235, %v234
    %s240 = scalar_lea.vmem [#allocation0], 42
    %241 = vst.msk [vmem:[%s240] sm:$0xc0] %vm235, %v234
    %s242 = scalar_lea.vmem %s0, 196
    %v243 = vld [vmem:[%s242] ss:$8 sm:$0x7]
    %s244 = scalar_lea.vmem %s0, 44
    %v245 = vld [vmem:[%s244] ss:$8 sm:$0x78]
    %vm246 = vcmask 1046531
    %v247 = vsel %vm246, %v245, %v243
    %s248 = scalar_lea.vmem %s0, 157
    %v249 = vld [vmem:[%s248] sm:$0x80]
    %vm250 = vcmask 1047559
    %v251 = vsel %vm250, %v249, %v247
    %252 = vrot.lane.b32.xlu0 %v251, 32
    %v253 = vpop.permute.xlu0 %252
    %vm254 = vcmask 326912
    %s255 = scalar_lea.vmem [#allocation0], 64
    %256 = vst.msk [vmem:[%s255] sm:$0x7] %vm254, %v253
    %257 = vst.msk [vmem:[#allocation0] ss:$6 sm:$0x18] %vm254, %v253
    %s258 = scalar_lea.vmem [#allocation0], 20
    %259 = vst.msk [vmem:[%s258] sm:$0x60] %vm254, %v253
    %s260 = scalar_lea.vmem [#allocation0], 43
    %261 = vst.msk [vmem:[%s260] sm:$0x80] %vm254, %v253
    %s262 = scalar_lea.vmem %s0, 172
    %v263 = vld [vmem:[%s262] ss:$8 sm:$0x7]
    %264 = vrot.lane.b32.xlu0 %v263, 32
    %v265 = vpop.permute.xlu0 %264
    %vm266 = vcmask 326912
    %s267 = scalar_lea.vmem [#allocation0], 56
    %268 = vst.msk [vmem:[%s267] sm:$0x7] %vm266, %v265
    %s269 = scalar_lea.vmem %s0, 3
    %v270 = vld [vmem:[%s269] ss:$8 sm:$0xf]
    %s271 = scalar_lea.vmem %s0, 3
    %v272 = vld [vmem:[%s271] ss:$8 sm:$0xf0]
    %vm273 = vcmask 1047556
    %v274 = vsel %vm273, %v272, %v270
    %275 = vrot.lane.b32.xlu0 %v274, 24
    %v276 = vpop.permute.xlu0 %275
    %vm277 = vcmask 261312
    %278 = vst.msk [vmem:[#allocation0] sm:$0x7] %vm277, %v276
    %s279 = scalar_lea.vmem [#allocation0], 5
    %280 = vst.msk [vmem:[%s279] sm:$0x38] %vm277, %v276
    %s281 = scalar_lea.vmem [#allocation0], 10
    %282 = vst.msk [vmem:[%s281] sm:$0xc0] %vm277, %v276
    %s283 = scalar_lea.vmem %s0, 99
    %v284 = vld [vmem:[%s283] ss:$8 sm:$0xf]
    %s285 = scalar_lea.vmem %s0, 99
    %v286 = vld [vmem:[%s285] ss:$8 sm:$0xf0]
    %vm287 = vcmask 1047556
    %v288 = vsel %vm287, %v286, %v284
    %289 = vrot.lane.b32.xlu0 %v288, 24
    %v290 = vpop.permute.xlu0 %289
    %vm291 = vcmask 261312
    %s292 = scalar_lea.vmem [#allocation0], 32
    %293 = vst.msk [vmem:[%s292] sm:$0x7] %vm291, %v290
    %s294 = scalar_lea.vmem [#allocation0], 37
    %295 = vst.msk [vmem:[%s294] sm:$0x38] %vm291, %v290
    %s296 = scalar_lea.vmem [#allocation0], 42
    %297 = vst.msk [vmem:[%s296] sm:$0xc0] %vm291, %v290
    %s298 = scalar_lea.vmem %s0, 195
    %v299 = vld [vmem:[%s298] ss:$8 sm:$0x7]
    %s300 = scalar_lea.vmem %s0, 43
    %v301 = vld [vmem:[%s300] ss:$8 sm:$0x78]
    %vm302 = vcmask 1046531
    %v303 = vsel %vm302, %v301, %v299
    %s304 = scalar_lea.vmem %s0, 156
    %v305 = vld [vmem:[%s304] sm:$0x80]
    %vm306 = vcmask 1047559
    %v307 = vsel %vm306, %v305, %v303
    %308 = vrot.lane.b32.xlu0 %v307, 24
    %v309 = vpop.permute.xlu0 %308
    %vm310 = vcmask 261312
    %s311 = scalar_lea.vmem [#allocation0], 64
    %312 = vst.msk [vmem:[%s311] sm:$0x7] %vm310, %v309
    %313 = vst.msk [vmem:[#allocation0] ss:$6 sm:$0x18] %vm310, %v309
    %s314 = scalar_lea.vmem [#allocation0], 20
    %315 = vst.msk [vmem:[%s314] sm:$0x60] %vm310, %v309
    %s316 = scalar_lea.vmem [#allocation0], 43
    %317 = vst.msk [vmem:[%s316] sm:$0x80] %vm310, %v309
    %s318 = scalar_lea.vmem %s0, 171
    %v319 = vld [vmem:[%s318] ss:$8 sm:$0x7]
    %320 = vrot.lane.b32.xlu0 %v319, 24
    %v321 = vpop.permute.xlu0 %320
    %vm322 = vcmask 261312
    %s323 = scalar_lea.vmem [#allocation0], 56
    %324 = vst.msk [vmem:[%s323] sm:$0x7] %vm322, %v321
    %s325 = scalar_lea.vmem %s0, 2
    %v326 = vld [vmem:[%s325] ss:$8 sm:$0xf]
    %s327 = scalar_lea.vmem %s0, 2
    %v328 = vld [vmem:[%s327] ss:$8 sm:$0xf0]
    %vm329 = vcmask 1047556
    %v330 = vsel %vm329, %v328, %v326
    %331 = vrot.lane.b32.xlu0 %v330, 16
    %v332 = vpop.permute.xlu0 %331
    %vm333 = vcmask 195712
    %334 = vst.msk [vmem:[#allocation0] sm:$0x7] %vm333, %v332
    %s335 = scalar_lea.vmem [#allocation0], 5
    %336 = vst.msk [vmem:[%s335] sm:$0x38] %vm333, %v332
    %s337 = scalar_lea.vmem [#allocation0], 10
    %338 = vst.msk [vmem:[%s337] sm:$0xc0] %vm333, %v332
    %s339 = scalar_lea.vmem %s0, 98
    %v340 = vld [vmem:[%s339] ss:$8 sm:$0xf]
    %s341 = scalar_lea.vmem %s0, 98
    %v342 = vld [vmem:[%s341] ss:$8 sm:$0xf0]
    %vm343 = vcmask 1047556
    %v344 = vsel %vm343, %v342, %v340
    %345 = vrot.lane.b32.xlu0 %v344, 16
    %v346 = vpop.permute.xlu0 %345
    %vm347 = vcmask 195712
    %s348 = scalar_lea.vmem [#allocation0], 32
    %349 = vst.msk [vmem:[%s348] sm:$0x7] %vm347, %v346
    %s350 = scalar_lea.vmem [#allocation0], 37
    %351 = vst.msk [vmem:[%s350] sm:$0x38] %vm347, %v346
    %s352 = scalar_lea.vmem [#allocation0], 42
    %353 = vst.msk [vmem:[%s352] sm:$0xc0] %vm347, %v346
    %s354 = scalar_lea.vmem %s0, 194
    %v355 = vld [vmem:[%s354] ss:$8 sm:$0x7]
    %s356 = scalar_lea.vmem %s0, 42
    %v357 = vld [vmem:[%s356] ss:$8 sm:$0x78]
    %vm358 = vcmask 1046531
    %v359 = vsel %vm358, %v357, %v355
    %s360 = scalar_lea.vmem %s0, 155
    %v361 = vld [vmem:[%s360] sm:$0x80]
    %vm362 = vcmask 1047559
    %v363 = vsel %vm362, %v361, %v359
    %364 = vrot.lane.b32.xlu0 %v363, 16
    %v365 = vpop.permute.xlu0 %364
    %vm366 = vcmask 195712
    %s367 = scalar_lea.vmem [#allocation0], 64
    %368 = vst.msk [vmem:[%s367] sm:$0x7] %vm366, %v365
    %369 = vst.msk [vmem:[#allocation0] ss:$6 sm:$0x18] %vm366, %v365
    %s370 = scalar_lea.vmem [#allocation0], 20
    %371 = vst.msk [vmem:[%s370] sm:$0x60] %vm366, %v365
    %s372 = scalar_lea.vmem [#allocation0], 43
    %373 = vst.msk [vmem:[%s372] sm:$0x80] %vm366, %v365
    %s374 = scalar_lea.vmem %s0, 170
    %v375 = vld [vmem:[%s374] ss:$8 sm:$0x7]
    %376 = vrot.lane.b32.xlu0 %v375, 16
    %v377 = vpop.permute.xlu0 %376
    %vm378 = vcmask 195712
    %s379 = scalar_lea.vmem [#allocation0], 56
    %380 = vst.msk [vmem:[%s379] sm:$0x7] %vm378, %v377
    %s381 = scalar_lea.vmem %s0, 1
    %v382 = vld [vmem:[%s381] ss:$8 sm:$0xf]
    %s383 = scalar_lea.vmem %s0, 1
    %v384 = vld [vmem:[%s383] ss:$8 sm:$0xf0]
    %vm385 = vcmask 1047556
    %v386 = vsel %vm385, %v384, %v382
    %387 = vrot.lane.b32.xlu0 %v386, 8
    %v388 = vpop.permute.xlu0 %387
    %vm389 = vcmask 130112
    %390 = vst.msk [vmem:[#allocation0] sm:$0x7] %vm389, %v388
    %s391 = scalar_lea.vmem [#allocation0], 5
    %392 = vst.msk [vmem:[%s391] sm:$0x38] %vm389, %v388
    %s393 = scalar_lea.vmem [#allocation0], 10
    %394 = vst.msk [vmem:[%s393] sm:$0xc0] %vm389, %v388
    %s395 = scalar_lea.vmem %s0, 97
    %v396 = vld [vmem:[%s395] ss:$8 sm:$0xf]
    %s397 = scalar_lea.vmem %s0, 97
    %v398 = vld [vmem:[%s397] ss:$8 sm:$0xf0]
    %vm399 = vcmask 1047556
    %v400 = vsel %vm399, %v398, %v396
    %401 = vrot.lane.b32.xlu0 %v400, 8
    %v402 = vpop.permute.xlu0 %401
    %vm403 = vcmask 130112
    %s404 = scalar_lea.vmem [#allocation0], 32
    %405 = vst.msk [vmem:[%s404] sm:$0x7] %vm403, %v402
    %s406 = scalar_lea.vmem [#allocation0], 37
    %407 = vst.msk [vmem:[%s406] sm:$0x38] %vm403, %v402
    %s408 = scalar_lea.vmem [#allocation0], 42
    %409 = vst.msk [vmem:[%s408] sm:$0xc0] %vm403, %v402
    %s410 = scalar_lea.vmem %s0, 193
    %v411 = vld [vmem:[%s410] ss:$8 sm:$0x7]
    %s412 = scalar_lea.vmem %s0, 41
    %v413 = vld [vmem:[%s412] ss:$8 sm:$0x78]
    %vm414 = vcmask 1046531
    %v415 = vsel %vm414, %v413, %v411
    %s416 = scalar_lea.vmem %s0, 154
    %v417 = vld [vmem:[%s416] sm:$0x80]
    %vm418 = vcmask 1047559
    %v419 = vsel %vm418, %v417, %v415
    %420 = vrot.lane.b32.xlu0 %v419, 8
    %v421 = vpop.permute.xlu0 %420
    %vm422 = vcmask 130112
    %s423 = scalar_lea.vmem [#allocation0], 64
    %424 = vst.msk [vmem:[%s423] sm:$0x7] %vm422, %v421
    %425 = vst.msk [vmem:[#allocation0] ss:$6 sm:$0x18] %vm422, %v421
    %s426 = scalar_lea.vmem [#allocation0], 20
    %427 = vst.msk [vmem:[%s426] sm:$0x60] %vm422, %v421
    %s428 = scalar_lea.vmem [#allocation0], 43
    %429 = vst.msk [vmem:[%s428] sm:$0x80] %vm422, %v421
    %s430 = scalar_lea.vmem %s0, 169
    %v431 = vld [vmem:[%s430] ss:$8 sm:$0x7]
    %432 = vrot.lane.b32.xlu0 %v431, 8
    %v433 = vpop.permute.xlu0 %432
    %vm434 = vcmask 130112
    %s435 = scalar_lea.vmem [#allocation0], 56
    %436 = vst.msk [vmem:[%s435] sm:$0x7] %vm434, %v433
    %s438 = sshll.u32 1, 4
    %s439 = ssub.s32 %s438, 1
    %v441 = vld [vmem:[#allocation0] sm:%s439]
    %s442 = sshll.u32 1, 4
    %s443 = ssub.s32 %s442, 1
    %444 = vst [vmem:[%s1] sm:%s443] %v441
    %s445 = scalar_lea.vmem [#allocation0], 8
    %v446 = vld [vmem:[%s445] sm:%s439]
    %s447 = sshll.u32 1, 4
    %s448 = ssub.s32 %s447, 1
    %s449 = scalar_lea.vmem %s1, 4
    %450 = vst [vmem:[%s449] sm:%s448] %v446
    %s451 = scalar_lea.vmem [#allocation0], 16
    %v452 = vld [vmem:[%s451] sm:%s439]
    %s453 = sshll.u32 1, 4
    %s454 = ssub.s32 %s453, 1
    %s455 = smul.addr 4, 2
    %s456 = scalar_lea.vmem %s1, %s455
    %457 = vst [vmem:[%s456] sm:%s454] %v452
    %s458 = scalar_lea.vmem [#allocation0], 24
    %v459 = vld [vmem:[%s458] sm:%s439]
    %s460 = sshll.u32 1, 4
    %s461 = ssub.s32 %s460, 1
    %s462 = smul.addr 4, 3
    %s463 = scalar_lea.vmem %s1, %s462
    %464 = vst [vmem:[%s463] sm:%s461] %v459
    %s465 = scalar_lea.vmem [#allocation0], 32
    %v466 = vld [vmem:[%s465] sm:%s439]
    %s467 = sshll.u32 1, 4
    %s468 = ssub.s32 %s467, 1
    %s469 = smul.addr 4, 4
    %s470 = scalar_lea.vmem %s1, %s469
    %471 = vst [vmem:[%s470] sm:%s468] %v466
    %s472 = scalar_lea.vmem [#allocation0], 40
    %v473 = vld [vmem:[%s472] sm:%s439]
    %s474 = sshll.u32 1, 4
    %s475 = ssub.s32 %s474, 1
    %s476 = smul.addr 4, 5
    %s477 = scalar_lea.vmem %s1, %s476
    %478 = vst [vmem:[%s477] sm:%s475] %v473
    %s479 = scalar_lea.vmem [#allocation0], 48
    %v480 = vld [vmem:[%s479] sm:%s439]
    %s481 = sshll.u32 1, 4
    %s482 = ssub.s32 %s481, 1
    %s483 = smul.addr 4, 6
    %s484 = scalar_lea.vmem %s1, %s483
    %485 = vst [vmem:[%s484] sm:%s482] %v480
    %s486 = scalar_lea.vmem [#allocation0], 56
    %v487 = vld [vmem:[%s486] sm:%s439]
    %s488 = sshll.u32 1, 4
    %s489 = ssub.s32 %s488, 1
    %s490 = smul.addr 4, 7
    %s491 = scalar_lea.vmem %s1, %s490
    %492 = vst [vmem:[%s491] sm:%s489] %v487
    %s493 = scalar_lea.vmem [#allocation0], 64
    %v494 = vld [vmem:[%s493] sm:%s439]
    %s495 = sshll.u32 1, 4
    %s496 = ssub.s32 %s495, 1
    %s497 = smul.addr 4, 8
    %s498 = scalar_lea.vmem %s1, %s497
    %499 = vst [vmem:[%s498] sm:%s496] %v494

// kernel: tile.46
$region0: #{tile.46}
  #allocation0 [shape = 's32[1]{0}', space=sflag, size = 0x4, scoped, tag = 'scoped memory for tile.46']
  %s0 = inlined_call_operand.vmem [shape: s32[8], index: 0, kind: input, shape index: {}]
  %s1 = inlined_call_operand.vmem [shape: s32[8,8], index: 1, kind: output, shape index: {}]
  // Predicated region
  $region2: #{tile.46} parent=0 // pred_check
    _
  $region3: #{tile.46} parent=0 // pred_check_branch
    %3 = sbr.rel (0) target = $region5
  $region4: #{tile.46} parent=0 // pred_region
    _
  $region5: #{tile.46} parent=0 // pred_fallthru
    _
  %v4 = vld [vmem:[%s0] ss:$0 sm:$0xff]
  %5 = vst [vmem:[%s1] sm:$0xff] %v4

// kernel: eq.9
$region0: #{eq.9}
  %s0 = inlined_call_operand.vmem [shape: s32[8,8], index: 0, kind: input, shape index: {}]
  %s1 = inlined_call_operand.vmem [shape: s32[64], index: 1, kind: output, shape index: {}]
  $region1: #{eq.9} parent=0
    #allocation0 [shape = 'u8[4096]{0}', space=vmem, size = 0x1000, scoped, tag = 'scoped mem for output reshape']
    %v2 = vld [vmem:[%s0] sm:$0x1]
    %vm3 = vcmask 64512
    %4 = vst.msk [vmem:[#allocation0] sm:$0x1] %vm3, %v2
    %s5 = scalar_lea.vmem %s0, 7
    %v6 = vld [vmem:[%s5] sm:$0x1]
    %7 = vrot.lane.b32.xlu0 %v6, 56
    %v8 = vpop.permute.xlu0 %7
    %vm9 = vcmask 523712
    %10 = vst.msk [vmem:[#allocation0] sm:$0x1] %vm9, %v8
    %s11 = scalar_lea.vmem %s0, 6
    %v12 = vld [vmem:[%s11] sm:$0x1]
    %13 = vrot.lane.b32.xlu0 %v12, 48
    %v14 = vpop.permute.xlu0 %13
    %vm15 = vcmask 458112
    %16 = vst.msk [vmem:[#allocation0] sm:$0x1] %vm15, %v14
    %s17 = scalar_lea.vmem %s0, 5
    %v18 = vld [vmem:[%s17] sm:$0x1]
    %19 = vrot.lane.b32.xlu0 %v18, 40
    %v20 = vpop.permute.xlu0 %19
    %vm21 = vcmask 392512
    %22 = vst.msk [vmem:[#allocation0] sm:$0x1] %vm21, %v20
    %s23 = scalar_lea.vmem %s0, 4
    %v24 = vld [vmem:[%s23] sm:$0x1]
    %25 = vrot.lane.b32.xlu0 %v24, 32
    %v26 = vpop.permute.xlu0 %25
    %vm27 = vcmask 326912
    %28 = vst.msk [vmem:[#allocation0] sm:$0x1] %vm27, %v26
    %s29 = scalar_lea.vmem %s0, 3
    %v30 = vld [vmem:[%s29] sm:$0x1]
    %31 = vrot.lane.b32.xlu0 %v30, 24
    %v32 = vpop.permute.xlu0 %31
    %vm33 = vcmask 261312
    %34 = vst.msk [vmem:[#allocation0] sm:$0x1] %vm33, %v32
    %s35 = scalar_lea.vmem %s0, 2
    %v36 = vld [vmem:[%s35] sm:$0x1]
    %37 = vrot.lane.b32.xlu0 %v36, 16
    %v38 = vpop.permute.xlu0 %37
    %vm39 = vcmask 195712
    %40 = vst.msk [vmem:[#allocation0] sm:$0x1] %vm39, %v38
    %s41 = scalar_lea.vmem %s0, 1
    %v42 = vld [vmem:[%s41] sm:$0x1]
    %43 = vrot.lane.b32.xlu0 %v42, 8
    %v44 = vpop.permute.xlu0 %43
    %vm45 = vcmask 130112
    %46 = vst.msk [vmem:[#allocation0] sm:$0x1] %vm45, %v44
    %s48 = sshll.u32 1, 1
    %s49 = ssub.s32 %s48, 1
    %v51 = vld [vmem:[#allocation0] sm:%s49]
    %s52 = sshll.u32 1, 1
    %s53 = ssub.s32 %s52, 1
    %54 = vst [vmem:[%s1] sm:%s53] %v51

// kernel: depthwise_conv3d_forward.1
$region0: #{depthwise_conv3d_forward.1}
  #allocation0 [shape = 'u32[]', space=smem, size = 0x4, offset = 0x4, fixed_abs, tag = 'smem constant byte address 0x4 - core index']
  #allocation1 [shape = 'u32[144,128]{1,0:T(1,128)}', space=vmem, size = 0x12000, scoped, tag = 'internal scratch']
  #allocation2 [shape = 'f32[10,10,80]{2,1,0:T(8,128)}', space=vmem, size = 0x14000, scoped, tag = 'scratch operand']
  %s0 = inlined_call_operand.vmem [shape: f32[2,8,8,64], index: 0, kind: input, shape index: {}]
  %s1 = inlined_call_operand.vmem [shape: f32[3,3,3,64], index: 1, kind: input, shape index: {}]
  %s2 = inlined_call_operand.vmem [shape: f32[1,64], index: 2, kind: input, shape index: {}]
  %s3 = inlined_call_operand.vmem [shape: f32[1,64], index: 3, kind: input, shape index: {}]
  %s4 = inlined_call_operand.vmem [shape: f32[1,64], index: 4, kind: input, shape index: {}]
  %s5 = inlined_call_operand.vmem [shape: f32[64,4], index: 5, kind: input, shape index: {}]
  %s6 = inlined_call_operand.vmem [shape: f32[4,64], index: 6, kind: input, shape index: {}]
  %s7 = inlined_call_operand.vmem [shape: bf16[64,128], index: 7, kind: input, shape index: {}]
  %s8 = inlined_call_operand.vmem [shape: f32[1,128], index: 8, kind: input, shape index: {}]
  %s9 = inlined_call_operand.vmem [shape: f32[2,64,128], index: 9, kind: output, shape index: {}]
  %s10 = sld [smem:[#allocation0]]
  $region69: #{depthwise_conv3d_forward.1} parent=0
    _
  %s12 = ssub.s32 1, %s10
  %s13 = scalar_select 0, %s12, %s10
  loop: start=0, step=1, limit=4
  $region2: #{depthwise_conv3d_forward.1} parent=0 // loop_pre_header
    _
  $region3: #{depthwise_conv3d_forward.1} parent=0 // loop_header
    %s15 = sphi 0, %s19
    %p16 = scmp.ge.s32.totalorder %s15, 4
    %s25 = sphi 0, %s27
    %s28 = sphi 0, %s25
    %s29 = sphi 0, %s28
    %s45 = sphi 0, %s29
    %s49 = sphi 0, %s49
    %s51 = sphi 0, %s49
    %s52 = sphi 0, %s51
    %s66 = sphi 0, %s52
    %s70 = sphi 0, %s70
    %s72 = sphi 0, %s70
    %s73 = sphi 0, %s72
    %s87 = sphi 0, %s73
    %s91 = sphi 0, %s91
    %s93 = sphi 0, %s91
    %s94 = sphi 0, %s93
    %s108 = sphi 0, %s94
    %s112 = sphi 0, %s112
    %s114 = sphi 0, %s112
    %s115 = sphi 0, %s114
    %s129 = sphi 0, %s115
    %s133 = sphi 0, %s133
    %s135 = sphi 0, %s133
    %s136 = sphi 0, %s135
    %s150 = sphi 0, %s136
    %s154 = sphi 0, %s154
    %s156 = sphi 0, %s154
    %s157 = sphi 0, %s156
    %s171 = sphi 0, %s157
    %s175 = sphi 0, %s175
    %s177 = sphi 0, %s175
    %s178 = sphi 0, %s177
    %s192 = sphi 0, %s178
    %s196 = sphi 0, %s196
    %s198 = sphi 0, %s196
    %s199 = sphi 0, %s198
    %s213 = sphi 0, %s199
    %s219 = sphi 0, %s221
    %s222 = sphi 0, %s219
    %s223 = sphi 0, %s222
    %s239 = sphi 0, %s223
  $region4: #{depthwise_conv3d_forward.1} parent=0 // loop_header_branch
    %18 = sbr.rel (%p16) target = $region8
  $region5: #{depthwise_conv3d_forward.1} parent=0 // loop_body
    %s20 = ssub.s32 %s15, 1
    %s21 = ssub.s32 %s15, 2
    %s22 = sadd.s32 %s15, 1
    %s23 = ssub.s32 %s15, %s22
    %p24 = scmp.eq.s32.totalorder %s23, 0
    %s26 = sadd.s32 %s25, 1
    %s27 = scalar_select %p24, %s25, %s26
    %p30 = pneg %p24
    %p31 = scmp.eq.s32.totalorder %s15, 1
    %p32 = por %p30, %p31
    %p33 = scmp.ne.s32.totalorder %s25, %s28
    %p34 = scmp.eq.s32.totalorder %s15, 0
    %p35 = por %p33, %p34
    %p36 = scmp.ne.s32.totalorder %s25, %s28
    %p37 = scmp.eq.s32.totalorder %s20, 1
    %p38 = por %p36, %p37
    %p39 = scmp.ne.s32.totalorder %s28, %s29
    %p40 = scmp.eq.s32.totalorder %s20, 0
    %p41 = por %p39, %p40
    %p42 = scmp.ne.s32.totalorder %s28, %s29
    %p43 = scmp.eq.s32.totalorder %s21, 1
    %p44 = por %p42, %p43
    %p46 = scmp.ne.s32.totalorder %s29, %s45
    %p47 = scmp.eq.s32.totalorder %s21, 0
    %p48 = por %p46, %p47
    %s50 = sadd.s32 %s49, 1
    %p53 = scmp.eq.s32.totalorder %s15, 1
    %p54 = scmp.ne.s32.totalorder %s49, %s51
    %p55 = scmp.eq.s32.totalorder %s15, 0
    %p56 = por %p54, %p55
    %p57 = scmp.ne.s32.totalorder %s49, %s51
    %p58 = scmp.eq.s32.totalorder %s20, 1
    %p59 = por %p57, %p58
    %p60 = scmp.ne.s32.totalorder %s51, %s52
    %p61 = scmp.eq.s32.totalorder %s20, 0
    %p62 = por %p60, %p61
    %p63 = scmp.ne.s32.totalorder %s51, %s52
    %p64 = scmp.eq.s32.totalorder %s21, 1
    %p65 = por %p63, %p64
    %p67 = scmp.ne.s32.totalorder %s52, %s66
    %p68 = scmp.eq.s32.totalorder %s21, 0
    %p69 = por %p67, %p68
    %s71 = sadd.s32 %s70, 1
    %p74 = scmp.eq.s32.totalorder %s15, 1
    %p75 = scmp.ne.s32.totalorder %s70, %s72
    %p76 = scmp.eq.s32.totalorder %s15, 0
    %p77 = por %p75, %p76
    %p78 = scmp.ne.s32.totalorder %s70, %s72
    %p79 = scmp.eq.s32.totalorder %s20, 1
    %p80 = por %p78, %p79
    %p81 = scmp.ne.s32.totalorder %s72, %s73
    %p82 = scmp.eq.s32.totalorder %s20, 0
    %p83 = por %p81, %p82
    %p84 = scmp.ne.s32.totalorder %s72, %s73
    %p85 = scmp.eq.s32.totalorder %s21, 1
    %p86 = por %p84, %p85
    %p88 = scmp.ne.s32.totalorder %s73, %s87
    %p89 = scmp.eq.s32.totalorder %s21, 0
    %p90 = por %p88, %p89
    %s92 = sadd.s32 %s91, 1
    %p95 = scmp.eq.s32.totalorder %s15, 1
    %p96 = scmp.ne.s32.totalorder %s91, %s93
    %p97 = scmp.eq.s32.totalorder %s15, 0
    %p98 = por %p96, %p97
    %p99 = scmp.ne.s32.totalorder %s91, %s93
    %p100 = scmp.eq.s32.totalorder %s20, 1
    %p101 = por %p99, %p100
    %p102 = scmp.ne.s32.totalorder %s93, %s94
    %p103 = scmp.eq.s32.totalorder %s20, 0
    %p104 = por %p102, %p103
    %p105 = scmp.ne.s32.totalorder %s93, %s94
    %p106 = scmp.eq.s32.totalorder %s21, 1
    %p107 = por %p105, %p106
    %p109 = scmp.ne.s32.totalorder %s94, %s108
    %p110 = scmp.eq.s32.totalorder %s21, 0
    %p111 = por %p109, %p110
    %s113 = sadd.s32 %s112, 1
    %p116 = scmp.eq.s32.totalorder %s15, 1
    %p117 = scmp.ne.s32.totalorder %s112, %s114
    %p118 = scmp.eq.s32.totalorder %s15, 0
    %p119 = por %p117, %p118
    %p120 = scmp.ne.s32.totalorder %s112, %s114
    %p121 = scmp.eq.s32.totalorder %s20, 1
    %p122 = por %p120, %p121
    %p123 = scmp.ne.s32.totalorder %s114, %s115
    %p124 = scmp.eq.s32.totalorder %s20, 0
    %p125 = por %p123, %p124
    %p126 = scmp.ne.s32.totalorder %s114, %s115
    %p127 = scmp.eq.s32.totalorder %s21, 1
    %p128 = por %p126, %p127
    %p130 = scmp.ne.s32.totalorder %s115, %s129
    %p131 = scmp.eq.s32.totalorder %s21, 0
    %p132 = por %p130, %p131
    %s134 = sadd.s32 %s133, 1
    %p137 = scmp.eq.s32.totalorder %s15, 1
    %p138 = scmp.ne.s32.totalorder %s133, %s135
    %p139 = scmp.eq.s32.totalorder %s15, 0
    %p140 = por %p138, %p139
    %p141 = scmp.ne.s32.totalorder %s133, %s135
    %p142 = scmp.eq.s32.totalorder %s20, 1
    %p143 = por %p141, %p142
    %p144 = scmp.ne.s32.totalorder %s135, %s136
    %p145 = scmp.eq.s32.totalorder %s20, 0
    %p146 = por %p144, %p145
    %p147 = scmp.ne.s32.totalorder %s135, %s136
    %p148 = scmp.eq.s32.totalorder %s21, 1
    %p149 = por %p147, %p148
    %p151 = scmp.ne.s32.totalorder %s136, %s150
    %p152 = scmp.eq.s32.totalorder %s21, 0
    %p153 = por %p151, %p152
    %s155 = sadd.s32 %s154, 1
    %p158 = scmp.eq.s32.totalorder %s15, 1
    %p159 = scmp.ne.s32.totalorder %s154, %s156
    %p160 = scmp.eq.s32.totalorder %s15, 0
    %p161 = por %p159, %p160
    %p162 = scmp.ne.s32.totalorder %s154, %s156
    %p163 = scmp.eq.s32.totalorder %s20, 1
    %p164 = por %p162, %p163
    %p165 = scmp.ne.s32.totalorder %s156, %s157
    %p166 = scmp.eq.s32.totalorder %s20, 0
    %p167 = por %p165, %p166
    %p168 = scmp.ne.s32.totalorder %s156, %s157
    %p169 = scmp.eq.s32.totalorder %s21, 1
    %p170 = por %p168, %p169
    %p172 = scmp.ne.s32.totalorder %s157, %s171
    %p173 = scmp.eq.s32.totalorder %s21, 0
    %p174 = por %p172, %p173
    %s176 = sadd.s32 %s175, 1
    %p179 = scmp.eq.s32.totalorder %s15, 1
    %p180 = scmp.ne.s32.totalorder %s175, %s177
    %p181 = scmp.eq.s32.totalorder %s15, 0
    %p182 = por %p180, %p181
    %p183 = scmp.ne.s32.totalorder %s175, %s177
    %p184 = scmp.eq.s32.totalorder %s20, 1
    %p185 = por %p183, %p184
    %p186 = scmp.ne.s32.totalorder %s177, %s178
    %p187 = scmp.eq.s32.totalorder %s20, 0
    %p188 = por %p186, %p187
    %p189 = scmp.ne.s32.totalorder %s177, %s178
    %p190 = scmp.eq.s32.totalorder %s21, 1
    %p191 = por %p189, %p190
    %p193 = scmp.ne.s32.totalorder %s178, %s192
    %p194 = scmp.eq.s32.totalorder %s21, 0
    %p195 = por %p193, %p194
    %s197 = sadd.s32 %s196, 1
    %p200 = scmp.eq.s32.totalorder %s15, 1
    %p201 = scmp.ne.s32.totalorder %s196, %s198
    %p202 = scmp.eq.s32.totalorder %s15, 0
    %p203 = por %p201, %p202
    %p204 = scmp.ne.s32.totalorder %s196, %s198
    %p205 = scmp.eq.s32.totalorder %s20, 1
    %p206 = por %p204, %p205
    %p207 = scmp.ne.s32.totalorder %s198, %s199
    %p208 = scmp.eq.s32.totalorder %s20, 0
    %p209 = por %p207, %p208
    %p210 = scmp.ne.s32.totalorder %s198, %s199
    %p211 = scmp.eq.s32.totalorder %s21, 1
    %p212 = por %p210, %p211
    %p214 = scmp.ne.s32.totalorder %s199, %s213
    %p215 = scmp.eq.s32.totalorder %s21, 0
    %p216 = por %p214, %p215
    %s217 = ssub.s32 %s15, %s22
    %p218 = scmp.eq.s32.totalorder %s217, 0
    %s220 = sadd.s32 %s219, 1
    %s221 = scalar_select %p218, %s219, %s220
    %p224 = pneg %p218
    %p225 = scmp.eq.s32.totalorder %s15, 1
    %p226 = por %p224, %p225
    %p227 = scmp.ne.s32.totalorder %s219, %s222
    %p228 = scmp.eq.s32.totalorder %s15, 0
    %p229 = por %p227, %p228
    %p230 = scmp.ne.s32.totalorder %s219, %s222
    %p231 = scmp.eq.s32.totalorder %s20, 1
    %p232 = por %p230, %p231
    %p233 = scmp.ne.s32.totalorder %s222, %s223
    %p234 = scmp.eq.s32.totalorder %s20, 0
    %p235 = por %p233, %p234
    %p236 = scmp.ne.s32.totalorder %s222, %s223
    %p237 = scmp.eq.s32.totalorder %s21, 1
    %p238 = por %p236, %p237
    %p240 = scmp.ne.s32.totalorder %s223, %s239
    %p241 = scmp.eq.s32.totalorder %s21, 0
    %p242 = por %p240, %p241
    %p243 = scmp.le.s32.totalorder 1, %s15
    %p244 = scmp.lt.s32.totalorder %s15, 3
    %p245 = pnand %p243, %p244
    %p246 = pneg %p245
    // Predicated region
    $region9: #{depthwise_conv3d_forward.1} parent=5 // pred_check
      _
    $region10: #{depthwise_conv3d_forward.1} parent=5 // pred_check_branch
      %248 = sbr.rel (%p245) target = $region12
    $region11: #{depthwise_conv3d_forward.1} parent=5 // pred_region
      %s249 = ssub.s32 %s15, 1
      // Predicated region
      $region13: #{depthwise_conv3d_forward.1} parent=11 // pred_check
        %p250 = pneg %p62
      $region14: #{depthwise_conv3d_forward.1} parent=11 // pred_check_branch
        %252 = sbr.rel (%p250) target = $region16
      $region15: #{depthwise_conv3d_forward.1} parent=11 // pred_region
        _
      $region16: #{depthwise_conv3d_forward.1} parent=11 // pred_fallthru
        _
      // Predicated region
      $region17: #{depthwise_conv3d_forward.1} parent=11 // pred_check
        %p253 = pneg %p83
      $region18: #{depthwise_conv3d_forward.1} parent=11 // pred_check_branch
        %255 = sbr.rel (%p253) target = $region20
      $region19: #{depthwise_conv3d_forward.1} parent=11 // pred_region
        _
      $region20: #{depthwise_conv3d_forward.1} parent=11 // pred_fallthru
        _
      // Predicated region
      $region21: #{depthwise_conv3d_forward.1} parent=11 // pred_check
        %p256 = pneg %p104
      $region22: #{depthwise_conv3d_forward.1} parent=11 // pred_check_branch
        %258 = sbr.rel (%p256) target = $region24
      $region23: #{depthwise_conv3d_forward.1} parent=11 // pred_region
        _
      $region24: #{depthwise_conv3d_forward.1} parent=11 // pred_fallthru
        _
      // Predicated region
      $region25: #{depthwise_conv3d_forward.1} parent=11 // pred_check
        %p259 = pneg %p125
      $region26: #{depthwise_conv3d_forward.1} parent=11 // pred_check_branch
        %261 = sbr.rel (%p259) target = $region28
      $region27: #{depthwise_conv3d_forward.1} parent=11 // pred_region
        _
      $region28: #{depthwise_conv3d_forward.1} parent=11 // pred_fallthru
        _
      // Predicated region
      $region29: #{depthwise_conv3d_forward.1} parent=11 // pred_check
        %p262 = pneg %p146
      $region30: #{depthwise_conv3d_forward.1} parent=11 // pred_check_branch
        %264 = sbr.rel (%p262) target = $region32
      $region31: #{depthwise_conv3d_forward.1} parent=11 // pred_region
        _
      $region32: #{depthwise_conv3d_forward.1} parent=11 // pred_fallthru
        _
      // Predicated region
      $region33: #{depthwise_conv3d_forward.1} parent=11 // pred_check
        %p265 = pneg %p167
      $region34: #{depthwise_conv3d_forward.1} parent=11 // pred_check_branch
        %267 = sbr.rel (%p265) target = $region36
      $region35: #{depthwise_conv3d_forward.1} parent=11 // pred_region
        _
      $region36: #{depthwise_conv3d_forward.1} parent=11 // pred_fallthru
        _
      // Predicated region
      $region37: #{depthwise_conv3d_forward.1} parent=11 // pred_check
        %p268 = pneg %p188
      $region38: #{depthwise_conv3d_forward.1} parent=11 // pred_check_branch
        %270 = sbr.rel (%p268) target = $region40
      $region39: #{depthwise_conv3d_forward.1} parent=11 // pred_region
        _
      $region40: #{depthwise_conv3d_forward.1} parent=11 // pred_fallthru
        _
      // Predicated region
      $region41: #{depthwise_conv3d_forward.1} parent=11 // pred_check
        %p271 = pneg %p209
      $region42: #{depthwise_conv3d_forward.1} parent=11 // pred_check_branch
        %273 = sbr.rel (%p271) target = $region44
      $region43: #{depthwise_conv3d_forward.1} parent=11 // pred_region
        _
      $region44: #{depthwise_conv3d_forward.1} parent=11 // pred_fallthru
        _
    $region12: #{depthwise_conv3d_forward.1} parent=5 // pred_fallthru
      _
    %p274 = scmp.lt.s32.totalorder %s15, 2
    // Predicated region
    $region45: #{depthwise_conv3d_forward.1} parent=5 // pred_check
      %p275 = pneg %p274
    $region46: #{depthwise_conv3d_forward.1} parent=5 // pred_check_branch
      %277 = sbr.rel (%p275) target = $region48
    $region47: #{depthwise_conv3d_forward.1} parent=5 // pred_region
      // Predicated region
      $region49: #{depthwise_conv3d_forward.1} parent=47 // pred_check
        %p278 = pneg %p35
      $region50: #{depthwise_conv3d_forward.1} parent=47 // pred_check_branch
        %280 = sbr.rel (%p278) target = $region52
      $region51: #{depthwise_conv3d_forward.1} parent=47 // pred_region
        %p281 = scmp.lt.s32.totalorder %s15, 1
        %s282 = scalar_select %p281, %s15, 1
        %s283 = smul.addr %s282, 8
        %s284 = smul.addr %s283, 8
        %s285 = scalar_lea.vmem %s0, %s284
      $region52: #{depthwise_conv3d_forward.1} parent=47 // pred_fallthru
        _
    $region48: #{depthwise_conv3d_forward.1} parent=5 // pred_fallthru
      _
    %p286 = scmp.le.s32.totalorder 1, %s15
    %p287 = scmp.lt.s32.totalorder %s15, 3
    %p288 = pnand %p286, %p287
    %p289 = pneg %p288
    // Predicated region
    $region53: #{depthwise_conv3d_forward.1} parent=5 // pred_check
      _
    $region54: #{depthwise_conv3d_forward.1} parent=5 // pred_check_branch
      %291 = sbr.rel (%p288) target = $region56
    $region55: #{depthwise_conv3d_forward.1} parent=5 // pred_region
      %s292 = ssub.s32 %s15, 1
      %p293 = scmp.lt.s32.totalorder %s20, 1
      %s294 = scalar_select %p293, %s20, 1
      %s295 = smul.addr %s294, 8
      %s296 = smul.addr %s295, 8
      %s297 = scalar_lea.vmem %s0, %s296
      %p298 = pneg %p41
      %p299 = pneg %p38
      %p300 = pneg %p62
      %p301 = pneg %p59
      %p302 = pneg %p83
      %p303 = pneg %p80
      %p304 = pneg %p104
      %p305 = pneg %p101
      %p306 = pneg %p125
      %p307 = pneg %p122
      %p308 = pneg %p146
      %p309 = pneg %p143
      %p310 = pneg %p167
      %p311 = pneg %p164
      %p312 = pneg %p188
      %p313 = pneg %p185
      %p314 = pneg %p209
      %p315 = pneg %p206
      %p316 = pneg %p235
      %p317 = pneg %p232
      %p318 = scmp.lt.s32.totalorder %s20, 1
      %s319 = scalar_select %p318, %s20, 1
      %s320 = smul.addr %s319, 8
      %s321 = smul.addr %s320, 8
      %s322 = scalar_lea.vmem %s9, %s321
      %p323 = scmp.lt.s32.totalorder %s20, 1
      %s324 = scalar_select %p323, %s20, 1
      %s325 = smul.addr %s324, 8
      %s326 = smul.addr %s325, 8
      %s327 = scalar_lea.vmem %s0, %s326
      %p328 = scmp.lt.s32.totalorder %s20, 1
      %s329 = scalar_select %p328, %s20, 1
      %s330 = smul.addr %s329, 8
      %s331 = smul.addr %s330, 8
      %s332 = scalar_lea.vmem %s9, %s331
      %vm334 = vcmask 654336
      %335 = vst.msk [vmem:[#allocation2] sm:$0xff] %vm334, 0.0
      %vm336 = vcmask 648192
      %337 = vst.msk [vmem:[#allocation2 + $0x8] sm:$0x3] %vm336, 0.0
      %338 = vst.msk [vmem:[#allocation2 + $0x10] sm:$0xff] %vm334, 0.0
      %339 = vst.msk [vmem:[#allocation2 + $0x18] sm:$0x3] %vm336, 0.0
      %340 = vst.msk [vmem:[#allocation2 + $0x20] sm:$0xff] %vm334, 0.0
      %341 = vst.msk [vmem:[#allocation2 + $0x28] sm:$0x3] %vm336, 0.0
      %342 = vst.msk [vmem:[#allocation2 + $0x30] sm:$0xff] %vm334, 0.0
      %343 = vst.msk [vmem:[#allocation2 + $0x38] sm:$0x3] %vm336, 0.0
      %344 = vst.msk [vmem:[#allocation2 + $0x40] sm:$0xff] %vm334, 0.0
      %345 = vst.msk [vmem:[#allocation2 + $0x48] sm:$0x3] %vm336, 0.0
      %346 = vst.msk [vmem:[#allocation2 + $0x50] sm:$0xff] %vm334, 0.0
      %347 = vst.msk [vmem:[#allocation2 + $0x58] sm:$0x3] %vm336, 0.0
      %348 = vst.msk [vmem:[#allocation2 + $0x60] sm:$0xff] %vm334, 0.0
      %349 = vst.msk [vmem:[#allocation2 + $0x68] sm:$0x3] %vm336, 0.0
      %350 = vst.msk [vmem:[#allocation2 + $0x70] sm:$0xff] %vm334, 0.0
      %351 = vst.msk [vmem:[#allocation2 + $0x78] sm:$0x3] %vm336, 0.0
      %352 = vst.msk [vmem:[#allocation2 + $0x80] sm:$0xff] %vm334, 0.0
      %353 = vst.msk [vmem:[#allocation2 + $0x88] sm:$0x3] %vm336, 0.0
      %354 = vst.msk [vmem:[#allocation2 + $0x90] sm:$0xff] %vm334, 0.0
      %355 = vst.msk [vmem:[#allocation2 + $0x98] sm:$0x3] %vm336, 0.0
      %v356 = vld [vmem:[%s327] sm:$0xff]
      %v357 = vld [vmem:[%s327 + $0x8] sm:$0xff]
      %v358 = vld [vmem:[%s327 + $0x10] sm:$0xff]
      %v359 = vld [vmem:[%s327 + $0x18] sm:$0xff]
      %v360 = vld [vmem:[%s327 + $0x20] sm:$0xff]
      %v361 = vld [vmem:[%s327 + $0x28] sm:$0xff]
      %v362 = vld [vmem:[%s327 + $0x30] sm:$0xff]
      %v363 = vld [vmem:[%s327 + $0x38] sm:$0xff]
      %372 = vrot.lane.b32.xlu0 %v356, 8
      %v373 = vpop.permute.xlu0 %372
      %374 = vrot.lane.b32.xlu0 %v357, 8
      %v375 = vpop.permute.xlu0 %374
      %376 = vrot.lane.b32.xlu0 %v358, 8
      %v377 = vpop.permute.xlu0 %376
      %378 = vrot.lane.b32.xlu0 %v359, 8
      %v379 = vpop.permute.xlu0 %378
      %380 = vrot.lane.b32.xlu0 %v360, 8
      %v381 = vpop.permute.xlu0 %380
      %382 = vrot.lane.b32.xlu0 %v361, 8
      %v383 = vpop.permute.xlu0 %382
      %384 = vrot.lane.b32.xlu0 %v362, 8
      %v385 = vpop.permute.xlu0 %384
      %386 = vrot.lane.b32.xlu0 %v363, 8
      %v387 = vpop.permute.xlu0 %386
      %s396 = scalar_lea.vmem [#allocation2], 16
      %vm397 = vcmask 588864
      %398 = vst.msk [vmem:[%s396 + $0x1] sm:$0xff] %vm397, %v373
      %399 = vst.msk [vmem:[%s396 + $0x11] sm:$0xff] %vm397, %v375
      %400 = vst.msk [vmem:[%s396 + $0x21] sm:$0xff] %vm397, %v377
      %401 = vst.msk [vmem:[%s396 + $0x31] sm:$0xff] %vm397, %v379
      %402 = vst.msk [vmem:[%s396 + $0x41] sm:$0xff] %vm397, %v381
      %403 = vst.msk [vmem:[%s396 + $0x51] sm:$0xff] %vm397, %v383
      %404 = vst.msk [vmem:[%s396 + $0x61] sm:$0xff] %vm397, %v385
      %405 = vst.msk [vmem:[%s396 + $0x71] sm:$0xff] %vm397, %v387
      %v406 = vld [vmem:[#allocation2] sm:$0xff]
      %v407 = vld [vmem:[#allocation2 + $0x10] sm:$0xff]
      %v408 = vld [vmem:[#allocation2 + $0x20] sm:$0xff]
      %v409 = vld [vmem:[#allocation2 + $0x30] sm:$0xff]
      %v410 = vld [vmem:[#allocation2 + $0x40] sm:$0xff]
      %v411 = vld [vmem:[#allocation2 + $0x50] sm:$0xff]
      %v412 = vld [vmem:[#allocation2 + $0x60] sm:$0xff]
      %v413 = vld [vmem:[#allocation2 + $0x70] sm:$0xff]
      %v414 = vld [vmem:[#allocation2 + $0x80] sm:$0xff]
      %v415 = vld [vmem:[#allocation2 + $0x90] sm:$0xff]
      %v416 = vld [vmem:[#allocation2 + $0x1] sm:$0xff]
      %v417 = vld [vmem:[#allocation2 + $0x11] sm:$0xff]
      %v418 = vld [vmem:[#allocation2 + $0x21] sm:$0xff]
      %v419 = vld [vmem:[#allocation2 + $0x31] sm:$0xff]
      %v420 = vld [vmem:[#allocation2 + $0x41] sm:$0xff]
      %v421 = vld [vmem:[#allocation2 + $0x51] sm:$0xff]
      %v422 = vld [vmem:[#allocation2 + $0x61] sm:$0xff]
      %v423 = vld [vmem:[#allocation2 + $0x71] sm:$0xff]
      %v424 = vld [vmem:[#allocation2 + $0x81] sm:$0xff]
      %v425 = vld [vmem:[#allocation2 + $0x91] sm:$0xff]
      %v426 = vld [vmem:[#allocation2 + $0x2] sm:$0xff]
      %v427 = vld [vmem:[#allocation2 + $0x12] sm:$0xff]
      %v428 = vld [vmem:[#allocation2 + $0x22] sm:$0xff]
      %v429 = vld [vmem:[#allocation2 + $0x32] sm:$0xff]
      %v430 = vld [vmem:[#allocation2 + $0x42] sm:$0xff]
      %v431 = vld [vmem:[#allocation2 + $0x52] sm:$0xff]
      %v432 = vld [vmem:[#allocation2 + $0x62] sm:$0xff]
      %v433 = vld [vmem:[#allocation2 + $0x72] sm:$0xff]
      %v434 = vld [vmem:[#allocation2 + $0x82] sm:$0xff]
      %v435 = vld [vmem:[#allocation2 + $0x92] sm:$0xff]
      %v436 = vld [vmem:[%s1] sm:$0x7]
      %v437 = vld [vmem:[%s1 + $0x4] sm:$0x7]
      %v438 = vld [vmem:[%s1 + $0x8] sm:$0x7]
      %v439 = vld [vmem:[%s1 + $0xc] sm:$0x7]
      %v440 = vld [vmem:[%s1 + $0x10] sm:$0x7]
      %v441 = vld [vmem:[%s1 + $0x14] sm:$0x7]
      %v442 = vld [vmem:[%s1 + $0x18] sm:$0x7]
      %v443 = vld [vmem:[%s1 + $0x1c] sm:$0x7]
      %v444 = vld [vmem:[%s1 + $0x20] sm:$0x7]
      %v445 = vlaneseq
      %v446 = vshrl.u32 %v445, 7
      %v447 = vsub.s32 0, %v446
      %v448 = vrot.slane %v436, %v447
      %v449 = vmul.f32 %v406, %v448
      %v450 = vmul.f32 %v407, %v448
      %v451 = vmul.f32 %v408, %v448
      %v452 = vmul.f32 %v409, %v448
      %v453 = vmul.f32 %v410, %v448
      %v454 = vmul.f32 %v411, %v448
      %v455 = vmul.f32 %v412, %v448
      %v456 = vmul.f32 %v413, %v448
      %v457 = vadd.f32 %v449, 0.0
      %v458 = vadd.f32 %v450, 0.0
      %v459 = vadd.f32 %v451, 0.0
      %v460 = vadd.f32 %v452, 0.0
      %v461 = vadd.f32 %v453, 0.0
      %v462 = vadd.f32 %v454, 0.0
      %v463 = vadd.f32 %v455, 0.0
      %v464 = vadd.f32 %v456, 0.0
      %v465 = vlaneseq
      %v466 = vshrl.u32 %v465, 7
      %v467 = vsub.s32 1, %v466
      %v468 = vrot.slane %v436, %v467
      %470 = vrot.lane.b32.xlu0 %v468, 8
      %v471 = vpop.permute.xlu0 %470
      %v473 = vmul.f32 %v406, %v471
      %v474 = vmul.f32 %v407, %v471
      %v475 = vmul.f32 %v408, %v471
      %v476 = vmul.f32 %v409, %v471
      %v477 = vmul.f32 %v410, %v471
      %v478 = vmul.f32 %v411, %v471
      %v479 = vmul.f32 %v412, %v471
      %v480 = vmul.f32 %v413, %v471
      %489 = vrot.lane.b32.xlu0 %v473, 120
      %v490 = vpop.permute.xlu0 %489
      %491 = vrot.lane.b32.xlu0 %v474, 120
      %v492 = vpop.permute.xlu0 %491
      %493 = vrot.lane.b32.xlu0 %v475, 120
      %v494 = vpop.permute.xlu0 %493
      %495 = vrot.lane.b32.xlu0 %v476, 120
      %v496 = vpop.permute.xlu0 %495
      %497 = vrot.lane.b32.xlu0 %v477, 120
      %v498 = vpop.permute.xlu0 %497
      %499 = vrot.lane.b32.xlu0 %v478, 120
      %v500 = vpop.permute.xlu0 %499
      %501 = vrot.lane.b32.xlu0 %v479, 120
      %v502 = vpop.permute.xlu0 %501
      %503 = vrot.lane.b32.xlu0 %v480, 120
      %v504 = vpop.permute.xlu0 %503
      %v513 = vadd.f32 %v457, %v490
      %v514 = vadd.f32 %v458, %v492
      %v515 = vadd.f32 %v459, %v494
      %v516 = vadd.f32 %v460, %v496
      %v517 = vadd.f32 %v461, %v498
      %v518 = vadd.f32 %v462, %v500
      %v519 = vadd.f32 %v463, %v502
      %v520 = vadd.f32 %v464, %v504
      %v521 = vlaneseq
      %v522 = vshrl.u32 %v521, 7
      %v523 = vsub.s32 2, %v522
      %v524 = vrot.slane %v436, %v523
      %526 = vrot.lane.b32.xlu0 %v524, 16
      %v527 = vpop.permute.xlu0 %526
      %v529 = vmul.f32 %v406, %v527
      %v530 = vmul.f32 %v407, %v527
      %v531 = vmul.f32 %v408, %v527
      %v532 = vmul.f32 %v409, %v527
      %v533 = vmul.f32 %v410, %v527
      %v534 = vmul.f32 %v411, %v527
      %v535 = vmul.f32 %v412, %v527
      %v536 = vmul.f32 %v413, %v527
      %545 = vrot.lane.b32.xlu0 %v529, 112
      %v546 = vpop.permute.xlu0 %545
      %547 = vrot.lane.b32.xlu0 %v530, 112
      %v548 = vpop.permute.xlu0 %547
      %549 = vrot.lane.b32.xlu0 %v531, 112
      %v550 = vpop.permute.xlu0 %549
      %551 = vrot.lane.b32.xlu0 %v532, 112
      %v552 = vpop.permute.xlu0 %551
      %553 = vrot.lane.b32.xlu0 %v533, 112
      %v554 = vpop.permute.xlu0 %553
      %555 = vrot.lane.b32.xlu0 %v534, 112
      %v556 = vpop.permute.xlu0 %555
      %557 = vrot.lane.b32.xlu0 %v535, 112
      %v558 = vpop.permute.xlu0 %557
      %559 = vrot.lane.b32.xlu0 %v536, 112
      %v560 = vpop.permute.xlu0 %559
      %v569 = vadd.f32 %v513, %v546
      %v570 = vadd.f32 %v514, %v548
      %v571 = vadd.f32 %v515, %v550
      %v572 = vadd.f32 %v516, %v552
      %v573 = vadd.f32 %v517, %v554
      %v574 = vadd.f32 %v518, %v556
      %v575 = vadd.f32 %v519, %v558
      %v576 = vadd.f32 %v520, %v560
      %v577 = vlaneseq
      %v578 = vshrl.u32 %v577, 7
      %v579 = vsub.s32 0, %v578
      %v580 = vrot.slane %v437, %v579
      %v581 = vmul.f32 %v416, %v580
      %v582 = vmul.f32 %v417, %v580
      %v583 = vmul.f32 %v418, %v580
      %v584 = vmul.f32 %v419, %v580
      %v585 = vmul.f32 %v420, %v580
      %v586 = vmul.f32 %v421, %v580
      %v587 = vmul.f32 %v422, %v580
      %v588 = vmul.f32 %v423, %v580
      %v589 = vadd.f32 %v569, %v581
      %v590 = vadd.f32 %v570, %v582
      %v591 = vadd.f32 %v571, %v583
      %v592 = vadd.f32 %v572, %v584
      %v593 = vadd.f32 %v573, %v585
      %v594 = vadd.f32 %v574, %v586
      %v595 = vadd.f32 %v575, %v587
      %v596 = vadd.f32 %v576, %v588
      %v597 = vlaneseq
      %v598 = vshrl.u32 %v597, 7
      %v599 = vsub.s32 1, %v598
      %v600 = vrot.slane %v437, %v599
      %602 = vrot.lane.b32.xlu0 %v600, 8
      %v603 = vpop.permute.xlu0 %602
      %v605 = vmul.f32 %v416, %v603
      %v606 = vmul.f32 %v417, %v603
      %v607 = vmul.f32 %v418, %v603
      %v608 = vmul.f32 %v419, %v603
      %v609 = vmul.f32 %v420, %v603
      %v610 = vmul.f32 %v421, %v603
      %v611 = vmul.f32 %v422, %v603
      %v612 = vmul.f32 %v423, %v603
      %621 = vrot.lane.b32.xlu0 %v605, 120
      %v622 = vpop.permute.xlu0 %621
      %623 = vrot.lane.b32.xlu0 %v606, 120
      %v624 = vpop.permute.xlu0 %623
      %625 = vrot.lane.b32.xlu0 %v607, 120
      %v626 = vpop.permute.xlu0 %625
      %627 = vrot.lane.b32.xlu0 %v608, 120
      %v628 = vpop.permute.xlu0 %627
      %629 = vrot.lane.b32.xlu0 %v609, 120
      %v630 = vpop.permute.xlu0 %629
      %631 = vrot.lane.b32.xlu0 %v610, 120
      %v632 = vpop.permute.xlu0 %631
      %633 = vrot.lane.b32.xlu0 %v611, 120
      %v634 = vpop.permute.xlu0 %633
      %635 = vrot.lane.b32.xlu0 %v612, 120
      %v636 = vpop.permute.xlu0 %635
      %v645 = vadd.f32 %v589, %v622
      %v646 = vadd.f32 %v590, %v624
      %v647 = vadd.f32 %v591, %v626
      %v648 = vadd.f32 %v592, %v628
      %v649 = vadd.f32 %v593, %v630
      %v650 = vadd.f32 %v594, %v632
      %v651 = vadd.f32 %v595, %v634
      %v652 = vadd.f32 %v596, %v636
      %v653 = vlaneseq
      %v654 = vshrl.u32 %v653, 7
      %v655 = vsub.s32 2, %v654
      %v656 = vrot.slane %v437, %v655
      %658 = vrot.lane.b32.xlu0 %v656, 16
      %v659 = vpop.permute.xlu0 %658
      %v661 = vmul.f32 %v416, %v659
      %v662 = vmul.f32 %v417, %v659
      %v663 = vmul.f32 %v418, %v659
      %v664 = vmul.f32 %v419, %v659
      %v665 = vmul.f32 %v420, %v659
      %v666 = vmul.f32 %v421, %v659
      %v667 = vmul.f32 %v422, %v659
      %v668 = vmul.f32 %v423, %v659
      %677 = vrot.lane.b32.xlu0 %v661, 112
      %v678 = vpop.permute.xlu0 %677
      %679 = vrot.lane.b32.xlu0 %v662, 112
      %v680 = vpop.permute.xlu0 %679
      %681 = vrot.lane.b32.xlu0 %v663, 112
      %v682 = vpop.permute.xlu0 %681
      %683 = vrot.lane.b32.xlu0 %v664, 112
      %v684 = vpop.permute.xlu0 %683
      %685 = vrot.lane.b32.xlu0 %v665, 112
      %v686 = vpop.permute.xlu0 %685
      %687 = vrot.lane.b32.xlu0 %v666, 112
      %v688 = vpop.permute.xlu0 %687
      %689 = vrot.lane.b32.xlu0 %v667, 112
      %v690 = vpop.permute.xlu0 %689
      %691 = vrot.lane.b32.xlu0 %v668, 112
      %v692 = vpop.permute.xlu0 %691
      %v701 = vadd.f32 %v645, %v678
      %v702 = vadd.f32 %v646, %v680
      %v703 = vadd.f32 %v647, %v682
      %v704 = vadd.f32 %v648, %v684
      %v705 = vadd.f32 %v649, %v686
      %v706 = vadd.f32 %v650, %v688
      %v707 = vadd.f32 %v651, %v690
      %v708 = vadd.f32 %v652, %v692
      %v709 = vlaneseq
      %v710 = vshrl.u32 %v709, 7
      %v711 = vsub.s32 0, %v710
      %v712 = vrot.slane %v438, %v711
      %v713 = vmul.f32 %v426, %v712
      %v714 = vmul.f32 %v427, %v712
      %v715 = vmul.f32 %v428, %v712
      %v716 = vmul.f32 %v429, %v712
      %v717 = vmul.f32 %v430, %v712
      %v718 = vmul.f32 %v431, %v712
      %v719 = vmul.f32 %v432, %v712
      %v720 = vmul.f32 %v433, %v712
      %v721 = vadd.f32 %v701, %v713
      %v722 = vadd.f32 %v702, %v714
      %v723 = vadd.f32 %v703, %v715
      %v724 = vadd.f32 %v704, %v716
      %v725 = vadd.f32 %v705, %v717
      %v726 = vadd.f32 %v706, %v718
      %v727 = vadd.f32 %v707, %v719
      %v728 = vadd.f32 %v708, %v720
      %v729 = vlaneseq
      %v730 = vshrl.u32 %v729, 7
      %v731 = vsub.s32 1, %v730
      %v732 = vrot.slane %v438, %v731
      %734 = vrot.lane.b32.xlu0 %v732, 8
      %v735 = vpop.permute.xlu0 %734
      %v737 = vmul.f32 %v426, %v735
      %v738 = vmul.f32 %v427, %v735
      %v739 = vmul.f32 %v428, %v735
      %v740 = vmul.f32 %v429, %v735
      %v741 = vmul.f32 %v430, %v735
      %v742 = vmul.f32 %v431, %v735
      %v743 = vmul.f32 %v432, %v735
      %v744 = vmul.f32 %v433, %v735
      %753 = vrot.lane.b32.xlu0 %v737, 120
      %v754 = vpop.permute.xlu0 %753
      %755 = vrot.lane.b32.xlu0 %v738, 120
      %v756 = vpop.permute.xlu0 %755
      %757 = vrot.lane.b32.xlu0 %v739, 120
      %v758 = vpop.permute.xlu0 %757
      %759 = vrot.lane.b32.xlu0 %v740, 120
      %v760 = vpop.permute.xlu0 %759
      %761 = vrot.lane.b32.xlu0 %v741, 120
      %v762 = vpop.permute.xlu0 %761
      %763 = vrot.lane.b32.xlu0 %v742, 120
      %v764 = vpop.permute.xlu0 %763
      %765 = vrot.lane.b32.xlu0 %v743, 120
      %v766 = vpop.permute.xlu0 %765
      %767 = vrot.lane.b32.xlu0 %v744, 120
      %v768 = vpop.permute.xlu0 %767
      %v777 = vadd.f32 %v721, %v754
      %v778 = vadd.f32 %v722, %v756
      %v779 = vadd.f32 %v723, %v758
      %v780 = vadd.f32 %v724, %v760
      %v781 = vadd.f32 %v725, %v762
      %v782 = vadd.f32 %v726, %v764
      %v783 = vadd.f32 %v727, %v766
      %v784 = vadd.f32 %v728, %v768
      %v785 = vlaneseq
      %v786 = vshrl.u32 %v785, 7
      %v787 = vsub.s32 2, %v786
      %v788 = vrot.slane %v438, %v787
      %790 = vrot.lane.b32.xlu0 %v788, 16
      %v791 = vpop.permute.xlu0 %790
      %v793 = vmul.f32 %v426, %v791
      %v794 = vmul.f32 %v427, %v791
      %v795 = vmul.f32 %v428, %v791
      %v796 = vmul.f32 %v429, %v791
      %v797 = vmul.f32 %v430, %v791
      %v798 = vmul.f32 %v431, %v791
      %v799 = vmul.f32 %v432, %v791
      %v800 = vmul.f32 %v433, %v791
      %809 = vrot.lane.b32.xlu0 %v793, 112
      %v810 = vpop.permute.xlu0 %809
      %811 = vrot.lane.b32.xlu0 %v794, 112
      %v812 = vpop.permute.xlu0 %811
      %813 = vrot.lane.b32.xlu0 %v795, 112
      %v814 = vpop.permute.xlu0 %813
      %815 = vrot.lane.b32.xlu0 %v796, 112
      %v816 = vpop.permute.xlu0 %815
      %817 = vrot.lane.b32.xlu0 %v797, 112
      %v818 = vpop.permute.xlu0 %817
      %819 = vrot.lane.b32.xlu0 %v798, 112
      %v820 = vpop.permute.xlu0 %819
      %821 = vrot.lane.b32.xlu0 %v799, 112
      %v822 = vpop.permute.xlu0 %821
      %823 = vrot.lane.b32.xlu0 %v800, 112
      %v824 = vpop.permute.xlu0 %823
      %v833 = vadd.f32 %v777, %v810
      %v834 = vadd.f32 %v778, %v812
      %v835 = vadd.f32 %v779, %v814
      %v836 = vadd.f32 %v780, %v816
      %v837 = vadd.f32 %v781, %v818
      %v838 = vadd.f32 %v782, %v820
      %v839 = vadd.f32 %v783, %v822
      %v840 = vadd.f32 %v784, %v824
      %v841 = vlaneseq
      %v842 = vshrl.u32 %v841, 7
      %v843 = vsub.s32 0, %v842
      %v844 = vrot.slane %v439, %v843
      %v845 = vmul.f32 %v407, %v844
      %v846 = vmul.f32 %v408, %v844
      %v847 = vmul.f32 %v409, %v844
      %v848 = vmul.f32 %v410, %v844
      %v849 = vmul.f32 %v411, %v844
      %v850 = vmul.f32 %v412, %v844
      %v851 = vmul.f32 %v413, %v844
      %v852 = vmul.f32 %v414, %v844
      %v853 = vadd.f32 %v833, %v845
      %v854 = vadd.f32 %v834, %v846
      %v855 = vadd.f32 %v835, %v847
      %v856 = vadd.f32 %v836, %v848
      %v857 = vadd.f32 %v837, %v849
      %v858 = vadd.f32 %v838, %v850
      %v859 = vadd.f32 %v839, %v851
      %v860 = vadd.f32 %v840, %v852
      %v861 = vlaneseq
      %v862 = vshrl.u32 %v861, 7
      %v863 = vsub.s32 1, %v862
      %v864 = vrot.slane %v439, %v863
      %866 = vrot.lane.b32.xlu0 %v864, 8
      %v867 = vpop.permute.xlu0 %866
      %v869 = vmul.f32 %v407, %v867
      %v870 = vmul.f32 %v408, %v867
      %v871 = vmul.f32 %v409, %v867
      %v872 = vmul.f32 %v410, %v867
      %v873 = vmul.f32 %v411, %v867
      %v874 = vmul.f32 %v412, %v867
      %v875 = vmul.f32 %v413, %v867
      %v876 = vmul.f32 %v414, %v867
      %885 = vrot.lane.b32.xlu0 %v869, 120
      %v886 = vpop.permute.xlu0 %885
      %887 = vrot.lane.b32.xlu0 %v870, 120
      %v888 = vpop.permute.xlu0 %887
      %889 = vrot.lane.b32.xlu0 %v871, 120
      %v890 = vpop.permute.xlu0 %889
      %891 = vrot.lane.b32.xlu0 %v872, 120
      %v892 = vpop.permute.xlu0 %891
      %893 = vrot.lane.b32.xlu0 %v873, 120
      %v894 = vpop.permute.xlu0 %893
      %895 = vrot.lane.b32.xlu0 %v874, 120
      %v896 = vpop.permute.xlu0 %895
      %897 = vrot.lane.b32.xlu0 %v875, 120
      %v898 = vpop.permute.xlu0 %897
      %899 = vrot.lane.b32.xlu0 %v876, 120
      %v900 = vpop.permute.xlu0 %899
      %v909 = vadd.f32 %v853, %v886
      %v910 = vadd.f32 %v854, %v888
      %v911 = vadd.f32 %v855, %v890
      %v912 = vadd.f32 %v856, %v892
      %v913 = vadd.f32 %v857, %v894
      %v914 = vadd.f32 %v858, %v896
      %v915 = vadd.f32 %v859, %v898
      %v916 = vadd.f32 %v860, %v900
      %v917 = vlaneseq
      %v918 = vshrl.u32 %v917, 7
      %v919 = vsub.s32 2, %v918
      %v920 = vrot.slane %v439, %v919
      %922 = vrot.lane.b32.xlu0 %v920, 16
      %v923 = vpop.permute.xlu0 %922
      %v925 = vmul.f32 %v407, %v923
      %v926 = vmul.f32 %v408, %v923
      %v927 = vmul.f32 %v409, %v923
      %v928 = vmul.f32 %v410, %v923
      %v929 = vmul.f32 %v411, %v923
      %v930 = vmul.f32 %v412, %v923
      %v931 = vmul.f32 %v413, %v923
      %v932 = vmul.f32 %v414, %v923
      %941 = vrot.lane.b32.xlu0 %v925, 112
      %v942 = vpop.permute.xlu0 %941
      %943 = vrot.lane.b32.xlu0 %v926, 112
      %v944 = vpop.permute.xlu0 %943
      %945 = vrot.lane.b32.xlu0 %v927, 112
      %v946 = vpop.permute.xlu0 %945
      %947 = vrot.lane.b32.xlu0 %v928, 112
      %v948 = vpop.permute.xlu0 %947
      %949 = vrot.lane.b32.xlu0 %v929, 112
      %v950 = vpop.permute.xlu0 %949
      %951 = vrot.lane.b32.xlu0 %v930, 112
      %v952 = vpop.permute.xlu0 %951
      %953 = vrot.lane.b32.xlu0 %v931, 112
      %v954 = vpop.permute.xlu0 %953
      %955 = vrot.lane.b32.xlu0 %v932, 112
      %v956 = vpop.permute.xlu0 %955
      %v965 = vadd.f32 %v909, %v942
      %v966 = vadd.f32 %v910, %v944
      %v967 = vadd.f32 %v911, %v946
      %v968 = vadd.f32 %v912, %v948
      %v969 = vadd.f32 %v913, %v950
      %v970 = vadd.f32 %v914, %v952
      %v971 = vadd.f32 %v915, %v954
      %v972 = vadd.f32 %v916, %v956
      %v973 = vlaneseq
      %v974 = vshrl.u32 %v973, 7
      %v975 = vsub.s32 0, %v974
      %v976 = vrot.slane %v440, %v975
      %v977 = vmul.f32 %v417, %v976
      %v978 = vmul.f32 %v418, %v976
      %v979 = vmul.f32 %v419, %v976
      %v980 = vmul.f32 %v420, %v976
      %v981 = vmul.f32 %v421, %v976
      %v982 = vmul.f32 %v422, %v976
      %v983 = vmul.f32 %v423, %v976
      %v984 = vmul.f32 %v424, %v976
      %v985 = vadd.f32 %v965, %v977
      %v986 = vadd.f32 %v966, %v978
      %v987 = vadd.f32 %v967, %v979
      %v988 = vadd.f32 %v968, %v980
      %v989 = vadd.f32 %v969, %v981
      %v990 = vadd.f32 %v970, %v982
      %v991 = vadd.f32 %v971, %v983
      %v992 = vadd.f32 %v972, %v984
      %v993 = vlaneseq
      %v994 = vshrl.u32 %v993, 7
      %v995 = vsub.s32 1, %v994
      %v996 = vrot.slane %v440, %v995
      %998 = vrot.lane.b32.xlu0 %v996, 8
      %v999 = vpop.permute.xlu0 %998
      %v1001 = vmul.f32 %v417, %v999
      %v1002 = vmul.f32 %v418, %v999
      %v1003 = vmul.f32 %v419, %v999
      %v1004 = vmul.f32 %v420, %v999
      %v1005 = vmul.f32 %v421, %v999
      %v1006 = vmul.f32 %v422, %v999
      %v1007 = vmul.f32 %v423, %v999
      %v1008 = vmul.f32 %v424, %v999
      %1017 = vrot.lane.b32.xlu0 %v1001, 120
      %v1018 = vpop.permute.xlu0 %1017
      %1019 = vrot.lane.b32.xlu0 %v1002, 120
      %v1020 = vpop.permute.xlu0 %1019
      %1021 = vrot.lane.b32.xlu0 %v1003, 120
      %v1022 = vpop.permute.xlu0 %1021
      %1023 = vrot.lane.b32.xlu0 %v1004, 120
      %v1024 = vpop.permute.xlu0 %1023
      %1025 = vrot.lane.b32.xlu0 %v1005, 120
      %v1026 = vpop.permute.xlu0 %1025
      %1027 = vrot.lane.b32.xlu0 %v1006, 120
      %v1028 = vpop.permute.xlu0 %1027
      %1029 = vrot.lane.b32.xlu0 %v1007, 120
      %v1030 = vpop.permute.xlu0 %1029
      %1031 = vrot.lane.b32.xlu0 %v1008, 120
      %v1032 = vpop.permute.xlu0 %1031
      %v1041 = vadd.f32 %v985, %v1018
      %v1042 = vadd.f32 %v986, %v1020
      %v1043 = vadd.f32 %v987, %v1022
      %v1044 = vadd.f32 %v988, %v1024
      %v1045 = vadd.f32 %v989, %v1026
      %v1046 = vadd.f32 %v990, %v1028
      %v1047 = vadd.f32 %v991, %v1030
      %v1048 = vadd.f32 %v992, %v1032
      %v1049 = vlaneseq
      %v1050 = vshrl.u32 %v1049, 7
      %v1051 = vsub.s32 2, %v1050
      %v1052 = vrot.slane %v440, %v1051
      %1054 = vrot.lane.b32.xlu0 %v1052, 16
      %v1055 = vpop.permute.xlu0 %1054
      %v1057 = vmul.f32 %v417, %v1055
      %v1058 = vmul.f32 %v418, %v1055
      %v1059 = vmul.f32 %v419, %v1055
      %v1060 = vmul.f32 %v420, %v1055
      %v1061 = vmul.f32 %v421, %v1055
      %v1062 = vmul.f32 %v422, %v1055
      %v1063 = vmul.f32 %v423, %v1055
      %v1064 = vmul.f32 %v424, %v1055
      %1073 = vrot.lane.b32.xlu0 %v1057, 112
      %v1074 = vpop.permute.xlu0 %1073
      %1075 = vrot.lane.b32.xlu0 %v1058, 112
      %v1076 = vpop.permute.xlu0 %1075
      %1077 = vrot.lane.b32.xlu0 %v1059, 112
      %v1078 = vpop.permute.xlu0 %1077
      %1079 = vrot.lane.b32.xlu0 %v1060, 112
      %v1080 = vpop.permute.xlu0 %1079
      %1081 = vrot.lane.b32.xlu0 %v1061, 112
      %v1082 = vpop.permute.xlu0 %1081
      %1083 = vrot.lane.b32.xlu0 %v1062, 112
      %v1084 = vpop.permute.xlu0 %1083
      %1085 = vrot.lane.b32.xlu0 %v1063, 112
      %v1086 = vpop.permute.xlu0 %1085
      %1087 = vrot.lane.b32.xlu0 %v1064, 112
      %v1088 = vpop.permute.xlu0 %1087
      %v1097 = vadd.f32 %v1041, %v1074
      %v1098 = vadd.f32 %v1042, %v1076
      %v1099 = vadd.f32 %v1043, %v1078
      %v1100 = vadd.f32 %v1044, %v1080
      %v1101 = vadd.f32 %v1045, %v1082
      %v1102 = vadd.f32 %v1046, %v1084
      %v1103 = vadd.f32 %v1047, %v1086
      %v1104 = vadd.f32 %v1048, %v1088
      %v1105 = vlaneseq
      %v1106 = vshrl.u32 %v1105, 7
      %v1107 = vsub.s32 0, %v1106
      %v1108 = vrot.slane %v441, %v1107
      %v1109 = vmul.f32 %v427, %v1108
      %v1110 = vmul.f32 %v428, %v1108
      %v1111 = vmul.f32 %v429, %v1108
      %v1112 = vmul.f32 %v430, %v1108
      %v1113 = vmul.f32 %v431, %v1108
      %v1114 = vmul.f32 %v432, %v1108
      %v1115 = vmul.f32 %v433, %v1108
      %v1116 = vmul.f32 %v434, %v1108
      %v1117 = vadd.f32 %v1097, %v1109
      %v1118 = vadd.f32 %v1098, %v1110
      %v1119 = vadd.f32 %v1099, %v1111
      %v1120 = vadd.f32 %v1100, %v1112
      %v1121 = vadd.f32 %v1101, %v1113
      %v1122 = vadd.f32 %v1102, %v1114
      %v1123 = vadd.f32 %v1103, %v1115
      %v1124 = vadd.f32 %v1104, %v1116
      %v1125 = vlaneseq
      %v1126 = vshrl.u32 %v1125, 7
      %v1127 = vsub.s32 1, %v1126
      %v1128 = vrot.slane %v441, %v1127
      %1130 = vrot.lane.b32.xlu0 %v1128, 8
      %v1131 = vpop.permute.xlu0 %1130
      %v1133 = vmul.f32 %v427, %v1131
      %v1134 = vmul.f32 %v428, %v1131
      %v1135 = vmul.f32 %v429, %v1131
      %v1136 = vmul.f32 %v430, %v1131
      %v1137 = vmul.f32 %v431, %v1131
      %v1138 = vmul.f32 %v432, %v1131
      %v1139 = vmul.f32 %v433, %v1131
      %v1140 = vmul.f32 %v434, %v1131
      %1149 = vrot.lane.b32.xlu0 %v1133, 120
      %v1150 = vpop.permute.xlu0 %1149
      %1151 = vrot.lane.b32.xlu0 %v1134, 120
      %v1152 = vpop.permute.xlu0 %1151
      %1153 = vrot.lane.b32.xlu0 %v1135, 120
      %v1154 = vpop.permute.xlu0 %1153
      %1155 = vrot.lane.b32.xlu0 %v1136, 120
      %v1156 = vpop.permute.xlu0 %1155
      %1157 = vrot.lane.b32.xlu0 %v1137, 120
      %v1158 = vpop.permute.xlu0 %1157
      %1159 = vrot.lane.b32.xlu0 %v1138, 120
      %v1160 = vpop.permute.xlu0 %1159
      %1161 = vrot.lane.b32.xlu0 %v1139, 120
      %v1162 = vpop.permute.xlu0 %1161
      %1163 = vrot.lane.b32.xlu0 %v1140, 120
      %v1164 = vpop.permute.xlu0 %1163
      %v1173 = vadd.f32 %v1117, %v1150
      %v1174 = vadd.f32 %v1118, %v1152
      %v1175 = vadd.f32 %v1119, %v1154
      %v1176 = vadd.f32 %v1120, %v1156
      %v1177 = vadd.f32 %v1121, %v1158
      %v1178 = vadd.f32 %v1122, %v1160
      %v1179 = vadd.f32 %v1123, %v1162
      %v1180 = vadd.f32 %v1124, %v1164
      %v1181 = vlaneseq
      %v1182 = vshrl.u32 %v1181, 7
      %v1183 = vsub.s32 2, %v1182
      %v1184 = vrot.slane %v441, %v1183
      %1186 = vrot.lane.b32.xlu0 %v1184, 16
      %v1187 = vpop.permute.xlu0 %1186
      %v1189 = vmul.f32 %v427, %v1187
      %v1190 = vmul.f32 %v428, %v1187
      %v1191 = vmul.f32 %v429, %v1187
      %v1192 = vmul.f32 %v430, %v1187
      %v1193 = vmul.f32 %v431, %v1187
      %v1194 = vmul.f32 %v432, %v1187
      %v1195 = vmul.f32 %v433, %v1187
      %v1196 = vmul.f32 %v434, %v1187
      %1205 = vrot.lane.b32.xlu0 %v1189, 112
      %v1206 = vpop.permute.xlu0 %1205
      %1207 = vrot.lane.b32.xlu0 %v1190, 112
      %v1208 = vpop.permute.xlu0 %1207
      %1209 = vrot.lane.b32.xlu0 %v1191, 112
      %v1210 = vpop.permute.xlu0 %1209
      %1211 = vrot.lane.b32.xlu0 %v1192, 112
      %v1212 = vpop.permute.xlu0 %1211
      %1213 = vrot.lane.b32.xlu0 %v1193, 112
      %v1214 = vpop.permute.xlu0 %1213
      %1215 = vrot.lane.b32.xlu0 %v1194, 112
      %v1216 = vpop.permute.xlu0 %1215
      %1217 = vrot.lane.b32.xlu0 %v1195, 112
      %v1218 = vpop.permute.xlu0 %1217
      %1219 = vrot.lane.b32.xlu0 %v1196, 112
      %v1220 = vpop.permute.xlu0 %1219
      %v1229 = vadd.f32 %v1173, %v1206
      %v1230 = vadd.f32 %v1174, %v1208
      %v1231 = vadd.f32 %v1175, %v1210
      %v1232 = vadd.f32 %v1176, %v1212
      %v1233 = vadd.f32 %v1177, %v1214
      %v1234 = vadd.f32 %v1178, %v1216
      %v1235 = vadd.f32 %v1179, %v1218
      %v1236 = vadd.f32 %v1180, %v1220
      %v1237 = vlaneseq
      %v1238 = vshrl.u32 %v1237, 7
      %v1239 = vsub.s32 0, %v1238
      %v1240 = vrot.slane %v442, %v1239
      %v1241 = vmul.f32 %v408, %v1240
      %v1242 = vmul.f32 %v409, %v1240
      %v1243 = vmul.f32 %v410, %v1240
      %v1244 = vmul.f32 %v411, %v1240
      %v1245 = vmul.f32 %v412, %v1240
      %v1246 = vmul.f32 %v413, %v1240
      %v1247 = vmul.f32 %v414, %v1240
      %v1248 = vmul.f32 %v415, %v1240
      %v1249 = vadd.f32 %v1229, %v1241
      %v1250 = vadd.f32 %v1230, %v1242
      %v1251 = vadd.f32 %v1231, %v1243
      %v1252 = vadd.f32 %v1232, %v1244
      %v1253 = vadd.f32 %v1233, %v1245
      %v1254 = vadd.f32 %v1234, %v1246
      %v1255 = vadd.f32 %v1235, %v1247
      %v1256 = vadd.f32 %v1236, %v1248
      %v1257 = vlaneseq
      %v1258 = vshrl.u32 %v1257, 7
      %v1259 = vsub.s32 1, %v1258
      %v1260 = vrot.slane %v442, %v1259
      %1262 = vrot.lane.b32.xlu0 %v1260, 8
      %v1263 = vpop.permute.xlu0 %1262
      %v1265 = vmul.f32 %v408, %v1263
      %v1266 = vmul.f32 %v409, %v1263
      %v1267 = vmul.f32 %v410, %v1263
      %v1268 = vmul.f32 %v411, %v1263
      %v1269 = vmul.f32 %v412, %v1263
      %v1270 = vmul.f32 %v413, %v1263
      %v1271 = vmul.f32 %v414, %v1263
      %v1272 = vmul.f32 %v415, %v1263
      %1281 = vrot.lane.b32.xlu0 %v1265, 120
      %v1282 = vpop.permute.xlu0 %1281
      %1283 = vrot.lane.b32.xlu0 %v1266, 120
      %v1284 = vpop.permute.xlu0 %1283
      %1285 = vrot.lane.b32.xlu0 %v1267, 120
      %v1286 = vpop.permute.xlu0 %1285
      %1287 = vrot.lane.b32.xlu0 %v1268, 120
      %v1288 = vpop.permute.xlu0 %1287
      %1289 = vrot.lane.b32.xlu0 %v1269, 120
      %v1290 = vpop.permute.xlu0 %1289
      %1291 = vrot.lane.b32.xlu0 %v1270, 120
      %v1292 = vpop.permute.xlu0 %1291
      %1293 = vrot.lane.b32.xlu0 %v1271, 120
      %v1294 = vpop.permute.xlu0 %1293
      %1295 = vrot.lane.b32.xlu0 %v1272, 120
      %v1296 = vpop.permute.xlu0 %1295
      %v1305 = vadd.f32 %v1249, %v1282
      %v1306 = vadd.f32 %v1250, %v1284
      %v1307 = vadd.f32 %v1251, %v1286
      %v1308 = vadd.f32 %v1252, %v1288
      %v1309 = vadd.f32 %v1253, %v1290
      %v1310 = vadd.f32 %v1254, %v1292
      %v1311 = vadd.f32 %v1255, %v1294
      %v1312 = vadd.f32 %v1256, %v1296
      %v1313 = vlaneseq
      %v1314 = vshrl.u32 %v1313, 7
      %v1315 = vsub.s32 2, %v1314
      %v1316 = vrot.slane %v442, %v1315
      %1318 = vrot.lane.b32.xlu0 %v1316, 16
      %v1319 = vpop.permute.xlu0 %1318
      %v1321 = vmul.f32 %v408, %v1319
      %v1322 = vmul.f32 %v409, %v1319
      %v1323 = vmul.f32 %v410, %v1319
      %v1324 = vmul.f32 %v411, %v1319
      %v1325 = vmul.f32 %v412, %v1319
      %v1326 = vmul.f32 %v413, %v1319
      %v1327 = vmul.f32 %v414, %v1319
      %v1328 = vmul.f32 %v415, %v1319
      %1337 = vrot.lane.b32.xlu0 %v1321, 112
      %v1338 = vpop.permute.xlu0 %1337
      %1339 = vrot.lane.b32.xlu0 %v1322, 112
      %v1340 = vpop.permute.xlu0 %1339
      %1341 = vrot.lane.b32.xlu0 %v1323, 112
      %v1342 = vpop.permute.xlu0 %1341
      %1343 = vrot.lane.b32.xlu0 %v1324, 112
      %v1344 = vpop.permute.xlu0 %1343
      %1345 = vrot.lane.b32.xlu0 %v1325, 112
      %v1346 = vpop.permute.xlu0 %1345
      %1347 = vrot.lane.b32.xlu0 %v1326, 112
      %v1348 = vpop.permute.xlu0 %1347
      %1349 = vrot.lane.b32.xlu0 %v1327, 112
      %v1350 = vpop.permute.xlu0 %1349
      %1351 = vrot.lane.b32.xlu0 %v1328, 112
      %v1352 = vpop.permute.xlu0 %1351
      %v1361 = vadd.f32 %v1305, %v1338
      %v1362 = vadd.f32 %v1306, %v1340
      %v1363 = vadd.f32 %v1307, %v1342
      %v1364 = vadd.f32 %v1308, %v1344
      %v1365 = vadd.f32 %v1309, %v1346
      %v1366 = vadd.f32 %v1310, %v1348
      %v1367 = vadd.f32 %v1311, %v1350
      %v1368 = vadd.f32 %v1312, %v1352
      %v1369 = vlaneseq
      %v1370 = vshrl.u32 %v1369, 7
      %v1371 = vsub.s32 0, %v1370
      %v1372 = vrot.slane %v443, %v1371
      %v1373 = vmul.f32 %v418, %v1372
      %v1374 = vmul.f32 %v419, %v1372
      %v1375 = vmul.f32 %v420, %v1372
      %v1376 = vmul.f32 %v421, %v1372
      %v1377 = vmul.f32 %v422, %v1372
      %v1378 = vmul.f32 %v423, %v1372
      %v1379 = vmul.f32 %v424, %v1372
      %v1380 = vmul.f32 %v425, %v1372
      %v1381 = vadd.f32 %v1361, %v1373
      %v1382 = vadd.f32 %v1362, %v1374
      %v1383 = vadd.f32 %v1363, %v1375
      %v1384 = vadd.f32 %v1364, %v1376
      %v1385 = vadd.f32 %v1365, %v1377
      %v1386 = vadd.f32 %v1366, %v1378
      %v1387 = vadd.f32 %v1367, %v1379
      %v1388 = vadd.f32 %v1368, %v1380
      %v1389 = vlaneseq
      %v1390 = vshrl.u32 %v1389, 7
      %v1391 = vsub.s32 1, %v1390
      %v1392 = vrot.slane %v443, %v1391
      %1394 = vrot.lane.b32.xlu0 %v1392, 8
      %v1395 = vpop.permute.xlu0 %1394
      %v1397 = vmul.f32 %v418, %v1395
      %v1398 = vmul.f32 %v419, %v1395
      %v1399 = vmul.f32 %v420, %v1395
      %v1400 = vmul.f32 %v421, %v1395
      %v1401 = vmul.f32 %v422, %v1395
      %v1402 = vmul.f32 %v423, %v1395
      %v1403 = vmul.f32 %v424, %v1395
      %v1404 = vmul.f32 %v425, %v1395
      %1413 = vrot.lane.b32.xlu0 %v1397, 120
      %v1414 = vpop.permute.xlu0 %1413
      %1415 = vrot.lane.b32.xlu0 %v1398, 120
      %v1416 = vpop.permute.xlu0 %1415
      %1417 = vrot.lane.b32.xlu0 %v1399, 120
      %v1418 = vpop.permute.xlu0 %1417
      %1419 = vrot.lane.b32.xlu0 %v1400, 120
      %v1420 = vpop.permute.xlu0 %1419
      %1421 = vrot.lane.b32.xlu0 %v1401, 120
      %v1422 = vpop.permute.xlu0 %1421
      %1423 = vrot.lane.b32.xlu0 %v1402, 120
      %v1424 = vpop.permute.xlu0 %1423
      %1425 = vrot.lane.b32.xlu0 %v1403, 120
      %v1426 = vpop.permute.xlu0 %1425
      %1427 = vrot.lane.b32.xlu0 %v1404, 120
      %v1428 = vpop.permute.xlu0 %1427
      %v1437 = vadd.f32 %v1381, %v1414
      %v1438 = vadd.f32 %v1382, %v1416
      %v1439 = vadd.f32 %v1383, %v1418
      %v1440 = vadd.f32 %v1384, %v1420
      %v1441 = vadd.f32 %v1385, %v1422
      %v1442 = vadd.f32 %v1386, %v1424
      %v1443 = vadd.f32 %v1387, %v1426
      %v1444 = vadd.f32 %v1388, %v1428
      %v1445 = vlaneseq
      %v1446 = vshrl.u32 %v1445, 7
      %v1447 = vsub.s32 2, %v1446
      %v1448 = vrot.slane %v443, %v1447
      %1450 = vrot.lane.b32.xlu0 %v1448, 16
      %v1451 = vpop.permute.xlu0 %1450
      %v1453 = vmul.f32 %v418, %v1451
      %v1454 = vmul.f32 %v419, %v1451
      %v1455 = vmul.f32 %v420, %v1451
      %v1456 = vmul.f32 %v421, %v1451
      %v1457 = vmul.f32 %v422, %v1451
      %v1458 = vmul.f32 %v423, %v1451
      %v1459 = vmul.f32 %v424, %v1451
      %v1460 = vmul.f32 %v425, %v1451
      %1469 = vrot.lane.b32.xlu0 %v1453, 112
      %v1470 = vpop.permute.xlu0 %1469
      %1471 = vrot.lane.b32.xlu0 %v1454, 112
      %v1472 = vpop.permute.xlu0 %1471
      %1473 = vrot.lane.b32.xlu0 %v1455, 112
      %v1474 = vpop.permute.xlu0 %1473
      %1475 = vrot.lane.b32.xlu0 %v1456, 112
      %v1476 = vpop.permute.xlu0 %1475
      %1477 = vrot.lane.b32.xlu0 %v1457, 112
      %v1478 = vpop.permute.xlu0 %1477
      %1479 = vrot.lane.b32.xlu0 %v1458, 112
      %v1480 = vpop.permute.xlu0 %1479
      %1481 = vrot.lane.b32.xlu0 %v1459, 112
      %v1482 = vpop.permute.xlu0 %1481
      %1483 = vrot.lane.b32.xlu0 %v1460, 112
      %v1484 = vpop.permute.xlu0 %1483
      %v1493 = vadd.f32 %v1437, %v1470
      %v1494 = vadd.f32 %v1438, %v1472
      %v1495 = vadd.f32 %v1439, %v1474
      %v1496 = vadd.f32 %v1440, %v1476
      %v1497 = vadd.f32 %v1441, %v1478
      %v1498 = vadd.f32 %v1442, %v1480
      %v1499 = vadd.f32 %v1443, %v1482
      %v1500 = vadd.f32 %v1444, %v1484
      %v1501 = vlaneseq
      %v1502 = vshrl.u32 %v1501, 7
      %v1503 = vsub.s32 0, %v1502
      %v1504 = vrot.slane %v444, %v1503
      %v1505 = vmul.f32 %v428, %v1504
      %v1506 = vmul.f32 %v429, %v1504
      %v1507 = vmul.f32 %v430, %v1504
      %v1508 = vmul.f32 %v431, %v1504
      %v1509 = vmul.f32 %v432, %v1504
      %v1510 = vmul.f32 %v433, %v1504
      %v1511 = vmul.f32 %v434, %v1504
      %v1512 = vmul.f32 %v435, %v1504
      %v1513 = vadd.f32 %v1493, %v1505
      %v1514 = vadd.f32 %v1494, %v1506
      %v1515 = vadd.f32 %v1495, %v1507
      %v1516 = vadd.f32 %v1496, %v1508
      %v1517 = vadd.f32 %v1497, %v1509
      %v1518 = vadd.f32 %v1498, %v1510
      %v1519 = vadd.f32 %v1499, %v1511
      %v1520 = vadd.f32 %v1500, %v1512
      %v1521 = vlaneseq
      %v1522 = vshrl.u32 %v1521, 7
      %v1523 = vsub.s32 1, %v1522
      %v1524 = vrot.slane %v444, %v1523
      %1526 = vrot.lane.b32.xlu0 %v1524, 8
      %v1527 = vpop.permute.xlu0 %1526
      %v1529 = vmul.f32 %v428, %v1527
      %v1530 = vmul.f32 %v429, %v1527
      %v1531 = vmul.f32 %v430, %v1527
      %v1532 = vmul.f32 %v431, %v1527
      %v1533 = vmul.f32 %v432, %v1527
      %v1534 = vmul.f32 %v433, %v1527
      %v1535 = vmul.f32 %v434, %v1527
      %v1536 = vmul.f32 %v435, %v1527
      %1545 = vrot.lane.b32.xlu0 %v1529, 120
      %v1546 = vpop.permute.xlu0 %1545
      %1547 = vrot.lane.b32.xlu0 %v1530, 120
      %v1548 = vpop.permute.xlu0 %1547
      %1549 = vrot.lane.b32.xlu0 %v1531, 120
      %v1550 = vpop.permute.xlu0 %1549
      %1551 = vrot.lane.b32.xlu0 %v1532, 120
      %v1552 = vpop.permute.xlu0 %1551
      %1553 = vrot.lane.b32.xlu0 %v1533, 120
      %v1554 = vpop.permute.xlu0 %1553
      %1555 = vrot.lane.b32.xlu0 %v1534, 120
      %v1556 = vpop.permute.xlu0 %1555
      %1557 = vrot.lane.b32.xlu0 %v1535, 120
      %v1558 = vpop.permute.xlu0 %1557
      %1559 = vrot.lane.b32.xlu0 %v1536, 120
      %v1560 = vpop.permute.xlu0 %1559
      %v1569 = vadd.f32 %v1513, %v1546
      %v1570 = vadd.f32 %v1514, %v1548
      %v1571 = vadd.f32 %v1515, %v1550
      %v1572 = vadd.f32 %v1516, %v1552
      %v1573 = vadd.f32 %v1517, %v1554
      %v1574 = vadd.f32 %v1518, %v1556
      %v1575 = vadd.f32 %v1519, %v1558
      %v1576 = vadd.f32 %v1520, %v1560
      %v1577 = vlaneseq
      %v1578 = vshrl.u32 %v1577, 7
      %v1579 = vsub.s32 2, %v1578
      %v1580 = vrot.slane %v444, %v1579
      %1582 = vrot.lane.b32.xlu0 %v1580, 16
      %v1583 = vpop.permute.xlu0 %1582
      %v1585 = vmul.f32 %v428, %v1583
      %v1586 = vmul.f32 %v429, %v1583
      %v1587 = vmul.f32 %v430, %v1583
      %v1588 = vmul.f32 %v431, %v1583
      %v1589 = vmul.f32 %v432, %v1583
      %v1590 = vmul.f32 %v433, %v1583
      %v1591 = vmul.f32 %v434, %v1583
      %v1592 = vmul.f32 %v435, %v1583
      %1601 = vrot.lane.b32.xlu0 %v1585, 112
      %v1602 = vpop.permute.xlu0 %1601
      %1603 = vrot.lane.b32.xlu0 %v1586, 112
      %v1604 = vpop.permute.xlu0 %1603
      %1605 = vrot.lane.b32.xlu0 %v1587, 112
      %v1606 = vpop.permute.xlu0 %1605
      %1607 = vrot.lane.b32.xlu0 %v1588, 112
      %v1608 = vpop.permute.xlu0 %1607
      %1609 = vrot.lane.b32.xlu0 %v1589, 112
      %v1610 = vpop.permute.xlu0 %1609
      %1611 = vrot.lane.b32.xlu0 %v1590, 112
      %v1612 = vpop.permute.xlu0 %1611
      %1613 = vrot.lane.b32.xlu0 %v1591, 112
      %v1614 = vpop.permute.xlu0 %1613
      %1615 = vrot.lane.b32.xlu0 %v1592, 112
      %v1616 = vpop.permute.xlu0 %1615
      %v1625 = vadd.f32 %v1569, %v1602
      %v1626 = vadd.f32 %v1570, %v1604
      %v1627 = vadd.f32 %v1571, %v1606
      %v1628 = vadd.f32 %v1572, %v1608
      %v1629 = vadd.f32 %v1573, %v1610
      %v1630 = vadd.f32 %v1574, %v1612
      %v1631 = vadd.f32 %v1575, %v1614
      %v1632 = vadd.f32 %v1576, %v1616
      %v1633 = vld [vmem:[%s2] sm:$0x1]
      %v1635 = vlaneseq
      %v1636 = vshrl.u32 %v1635, 7
      %v1637 = vsub.s32 0, %v1636
      %v1638 = vrot.slane %v1633, %v1637
      %v1640 = vadd.f32 %v1625, %v1638
      %v1641 = vadd.f32 %v1626, %v1638
      %v1642 = vadd.f32 %v1627, %v1638
      %v1643 = vadd.f32 %v1628, %v1638
      %v1644 = vadd.f32 %v1629, %v1638
      %v1645 = vadd.f32 %v1630, %v1638
      %v1646 = vadd.f32 %v1631, %v1638
      %v1647 = vadd.f32 %v1632, %v1638
      %v1648 = vld [vmem:[%s5] sm:$0xff]
      %v1649 = vld [vmem:[%s5 + $0x8] sm:$0xff]
      %v1650 = vld [vmem:[%s5 + $0x10] sm:$0xff]
      %v1651 = vld [vmem:[%s5 + $0x18] sm:$0xff]
      %v1652 = vld [vmem:[%s5 + $0x20] sm:$0xff]
      %v1653 = vld [vmem:[%s5 + $0x28] sm:$0xff]
      %v1654 = vld [vmem:[%s5 + $0x30] sm:$0xff]
      %v1655 = vld [vmem:[%s5 + $0x38] sm:$0xff]
      %v1656 = vld [vmem:[%s6] sm:$0xf]
      %vm1657 = vcmask 523264
      %v1658 = vsel %vm1657, %v1640, 0.0
      %v1659 = vsel %vm1657, %v1641, 0.0
      %v1660 = vadd.f32 %v1658, %v1659
      %v1661 = vsel %vm1657, %v1642, 0.0
      %v1662 = vadd.f32 %v1660, %v1661
      %v1663 = vsel %vm1657, %v1643, 0.0
      %v1664 = vadd.f32 %v1662, %v1663
      %v1665 = vsel %vm1657, %v1644, 0.0
      %v1666 = vadd.f32 %v1664, %v1665
      %v1667 = vsel %vm1657, %v1645, 0.0
      %v1668 = vadd.f32 %v1666, %v1667
      %v1669 = vsel %vm1657, %v1646, 0.0
      %v1670 = vadd.f32 %v1668, %v1669
      %v1671 = vsel %vm1657, %v1647, 0.0
      %v1672 = vadd.f32 %v1670, %v1671
      %v1673 = vrot.slane %v1672, 4
      %v1674 = vadd.f32 %v1672, %v1673
      %v1675 = vrot.slane %v1674, 2
      %v1676 = vadd.f32 %v1674, %v1675
      %v1677 = vrot.slane %v1676, 1
      %v1678 = vadd.f32 %v1676, %v1677
      %v1680 = vsel %vm1657, %v1678, 0
      %1682 = vmatprep.subr.mxu0 0.0
      %1683 = vmatpush1.msra.mxu0 0.0
      %1684 = vmatprep.subr.mxu0 0.0
      %1685 = vmatpush1.msra.mxu0 0.0
      %1686 = vmatprep.subr.mxu0 0.0
      %1687 = vmatpush1.msra.mxu0 0.0
      %1688 = vmatprep.subr.mxu0 0.0
      %1689 = vmatpush1.msra.mxu0 0.0
      %1690 = vmatprep.subr.mxu0 0.0
      %1691 = vmatpush1.msra.mxu0 0.0
      %1692 = vmatprep.subr.mxu0 0.0
      %1693 = vmatpush1.msra.mxu0 0.0
      %1694 = vmatprep.subr.mxu0 0.0
      %1695 = vmatpush1.msra.mxu0 0.0
      %1696 = vmatprep.subr.mxu0 0.0
      %1697 = vmatpush1.msra.mxu0 0.0
      %1698 = vmatprep.subr.mxu0 0.0
      %1699 = vmatpush1.msra.mxu0 %v1655
      %1700 = vmatprep.subr.mxu0 0.0
      %1701 = vmatpush1.msra.mxu0 %v1654
      %1702 = vmatprep.subr.mxu0 0.0
      %1703 = vmatpush1.msra.mxu0 %v1653
      %1704 = vmatprep.subr.mxu0 0.0
      %1705 = vmatpush1.msra.mxu0 %v1652
      %1706 = vmatprep.subr.mxu0 0.0
      %1707 = vmatpush1.msra.mxu0 %v1651
      %1708 = vmatprep.subr.mxu0 0.0
      %1709 = vmatpush1.msra.mxu0 %v1650
      %1710 = vmatprep.subr.mxu0 0.0
      %1711 = vmatpush1.msra.mxu0 %v1649
      %1712 = vmatprep.subr.mxu0 0.0
      %1713 = vmatpush1.msra.mxu0 %v1648
      %1714 = vmatprep.subr.mxu0 0.0
      %1715 = vmatpush2.msra.mxu0 0.0
      %1716 = vmatprep.subr.mxu0 0.0
      %1717 = vmatpush2.msra.mxu0 0.0
      %1718 = vmatprep.subr.mxu0 0.0
      %1719 = vmatpush2.msra.mxu0 0.0
      %1720 = vmatprep.subr.mxu0 0.0
      %1721 = vmatpush2.msra.mxu0 0.0
      %1722 = vmatprep.subr.mxu0 0.0
      %1723 = vmatpush2.msra.mxu0 0.0
      %1724 = vmatprep.subr.mxu0 0.0
      %1725 = vmatpush2.msra.mxu0 0.0
      %1726 = vmatprep.subr.mxu0 0.0
      %1727 = vmatpush2.msra.mxu0 0.0
      %1728 = vmatprep.subr.mxu0 0.0
      %1729 = vmatpush2.msra.mxu0 0.0
      %1730 = vmatprep.subr.mxu0 0.0
      %1731 = vmatpush2.msra.mxu0 0.0
      %1732 = vmatprep.subr.mxu0 0.0
      %1733 = vmatpush2.msra.mxu0 0.0
      %1734 = vmatprep.subr.mxu0 0.0
      %1735 = vmatpush2.msra.mxu0 0.0
      %1736 = vmatprep.subr.mxu0 0.0
      %1737 = vmatpush2.msra.mxu0 0.0
      %1738 = vmatprep.subr.mxu0 0.0
      %1739 = vmatpush2.msra.mxu0 0.0
      %1740 = vmatprep.subr.mxu0 0.0
      %1741 = vmatpush2.msra.mxu0 0.0
      %1742 = vmatprep.subr.mxu0 0.0
      %1743 = vmatpush2.msra.mxu0 0.0
      %1744 = vmatprep.subr.mxu0 0.0
      %1745 = vmatpush2.msra.mxu0 0.0
      %1746 = vmatprep.mubr.f32.mxu0 0.0
      %1747 = vmatmul.mubr.f32.gmra.mxu0 %v1680
      %v1748 = vpop.f32.mrf.mxu0
      %v1749 = vadd.f32 0.0, %v1748
      %v1750 = vpop.f32.mrf.mxu0
      %1751 = vdwg.mxu0
      %v1752 = vmul.f32 %v1749, 0.0009765625
      %vm1753 = vcmask 31744
      %v1755 = vsel %vm1753, %v1752, 0
      %vm1757 = vcmask 1043456
      %v1759 = vsel %vm1757, %v1656, 0
      %1761 = vmatprep.subr.mxu0 0.0
      %1762 = vmatpush1.msra.mxu0 0.0
      %1763 = vmatprep.subr.mxu0 0.0
      %1764 = vmatpush1.msra.mxu0 0.0
      %1765 = vmatprep.subr.mxu0 0.0
      %1766 = vmatpush1.msra.mxu0 0.0
      %1767 = vmatprep.subr.mxu0 0.0
      %1768 = vmatpush1.msra.mxu0 0.0
      %1769 = vmatprep.subr.mxu0 0.0
      %1770 = vmatpush1.msra.mxu0 0.0
      %1771 = vmatprep.subr.mxu0 0.0
      %1772 = vmatpush1.msra.mxu0 0.0
      %1773 = vmatprep.subr.mxu0 0.0
      %1774 = vmatpush1.msra.mxu0 0.0
      %1775 = vmatprep.subr.mxu0 0.0
      %1776 = vmatpush1.msra.mxu0 0.0
      %1777 = vmatprep.subr.mxu0 0.0
      %1778 = vmatpush1.msra.mxu0 0.0
      %1779 = vmatprep.subr.mxu0 0.0
      %1780 = vmatpush1.msra.mxu0 0.0
      %1781 = vmatprep.subr.mxu0 0.0
      %1782 = vmatpush1.msra.mxu0 0.0
      %1783 = vmatprep.subr.mxu0 0.0
      %1784 = vmatpush1.msra.mxu0 0.0
      %1785 = vmatprep.subr.mxu0 0.0
      %1786 = vmatpush1.msra.mxu0 0.0
      %1787 = vmatprep.subr.mxu0 0.0
      %1788 = vmatpush1.msra.mxu0 0.0
      %1789 = vmatprep.subr.mxu0 0.0
      %1790 = vmatpush1.msra.mxu0 0.0
      %1791 = vmatprep.subr.mxu0 0.0
      %1792 = vmatpush1.msra.mxu0 %v1759
      %1793 = vmatprep.subr.mxu0 0.0
      %1794 = vmatpush2.msra.mxu0 0.0
      %1795 = vmatprep.subr.mxu0 0.0
      %1796 = vmatpush2.msra.mxu0 0.0
      %1797 = vmatprep.subr.mxu0 0.0
      %1798 = vmatpush2.msra.mxu0 0.0
      %1799 = vmatprep.subr.mxu0 0.0
      %1800 = vmatpush2.msra.mxu0 0.0
      %1801 = vmatprep.subr.mxu0 0.0
      %1802 = vmatpush2.msra.mxu0 0.0
      %1803 = vmatprep.subr.mxu0 0.0
      %1804 = vmatpush2.msra.mxu0 0.0
      %1805 = vmatprep.subr.mxu0 0.0
      %1806 = vmatpush2.msra.mxu0 0.0
      %1807 = vmatprep.subr.mxu0 0.0
      %1808 = vmatpush2.msra.mxu0 0.0
      %1809 = vmatprep.subr.mxu0 0.0
      %1810 = vmatpush2.msra.mxu0 0.0
      %1811 = vmatprep.subr.mxu0 0.0
      %1812 = vmatpush2.msra.mxu0 0.0
      %1813 = vmatprep.subr.mxu0 0.0
      %1814 = vmatpush2.msra.mxu0 0.0
      %1815 = vmatprep.subr.mxu0 0.0
      %1816 = vmatpush2.msra.mxu0 0.0
      %1817 = vmatprep.subr.mxu0 0.0
      %1818 = vmatpush2.msra.mxu0 0.0
      %1819 = vmatprep.subr.mxu0 0.0
      %1820 = vmatpush2.msra.mxu0 0.0
      %1821 = vmatprep.subr.mxu0 0.0
      %1822 = vmatpush2.msra.mxu0 0.0
      %1823 = vmatprep.subr.mxu0 0.0
      %1824 = vmatpush2.msra.mxu0 0.0
      %1825 = vmatprep.mubr.f32.mxu0 0.0
      %1826 = vmatmul.mubr.f32.gmra.mxu0 %v1755
      %v1827 = vpop.f32.mrf.mxu0
      %v1828 = vadd.f32 0.0, %v1827
      %v1829 = vpop.f32.mrf.mxu0
      %1830 = vdwg.mxu0
      %v1831 = vlaneseq
      %v1832 = vshrl.u32 %v1831, 7
      %v1833 = vsub.s32 0, %v1832
      %v1834 = vrot.slane %v1828, %v1833
      %v1835 = vsub.f32 %v1640, %v1834
      %v1836 = vsub.f32 %v1641, %v1834
      %v1837 = vsub.f32 %v1642, %v1834
      %v1838 = vsub.f32 %v1643, %v1834
      %v1839 = vsub.f32 %v1644, %v1834
      %v1840 = vsub.f32 %v1645, %v1834
      %v1841 = vsub.f32 %v1646, %v1834
      %v1842 = vsub.f32 %v1647, %v1834
      %v1843 = vmul.f32 %v1835, %v1835
      %v1844 = vmul.f32 %v1836, %v1836
      %v1845 = vmul.f32 %v1837, %v1837
      %v1846 = vmul.f32 %v1838, %v1838
      %v1847 = vmul.f32 %v1839, %v1839
      %v1848 = vmul.f32 %v1840, %v1840
      %v1849 = vmul.f32 %v1841, %v1841
      %v1850 = vmul.f32 %v1842, %v1842
      %v1851 = vsel %vm1657, %v1843, 0.0
      %v1852 = vsel %vm1657, %v1844, 0.0
      %v1853 = vadd.f32 %v1851, %v1852
      %v1854 = vsel %vm1657, %v1845, 0.0
      %v1855 = vadd.f32 %v1853, %v1854
      %v1856 = vsel %vm1657, %v1846, 0.0
      %v1857 = vadd.f32 %v1855, %v1856
      %v1858 = vsel %vm1657, %v1847, 0.0
      %v1859 = vadd.f32 %v1857, %v1858
      %v1860 = vsel %vm1657, %v1848, 0.0
      %v1861 = vadd.f32 %v1859, %v1860
      %v1862 = vsel %vm1657, %v1849, 0.0
      %v1863 = vadd.f32 %v1861, %v1862
      %v1864 = vsel %vm1657, %v1850, 0.0
      %v1865 = vadd.f32 %v1863, %v1864
      %v1866 = vrot.slane %v1865, 4
      %v1867 = vadd.f32 %v1865, %v1866
      %v1868 = vrot.slane %v1867, 2
      %v1869 = vadd.f32 %v1867, %v1868
      %v1870 = vrot.slane %v1869, 1
      %v1871 = vadd.f32 %v1869, %v1870
      %v1873 = vsel %vm1657, %v1871, 0
      %1875 = vmatprep.subr.mxu0 0.0
      %1876 = vmatpush1.msra.mxu0 0.0
      %1877 = vmatprep.subr.mxu0 0.0
      %1878 = vmatpush1.msra.mxu0 0.0
      %1879 = vmatprep.subr.mxu0 0.0
      %1880 = vmatpush1.msra.mxu0 0.0
      %1881 = vmatprep.subr.mxu0 0.0
      %1882 = vmatpush1.msra.mxu0 0.0
      %1883 = vmatprep.subr.mxu0 0.0
      %1884 = vmatpush1.msra.mxu0 0.0
      %1885 = vmatprep.subr.mxu0 0.0
      %1886 = vmatpush1.msra.mxu0 0.0
      %1887 = vmatprep.subr.mxu0 0.0
      %1888 = vmatpush1.msra.mxu0 0.0
      %1889 = vmatprep.subr.mxu0 0.0
      %1890 = vmatpush1.msra.mxu0 0.0
      %1891 = vmatprep.subr.mxu0 0.0
      %1892 = vmatpush1.msra.mxu0 %v1655
      %1893 = vmatprep.subr.mxu0 0.0
      %1894 = vmatpush1.msra.mxu0 %v1654
      %1895 = vmatprep.subr.mxu0 0.0
      %1896 = vmatpush1.msra.mxu0 %v1653
      %1897 = vmatprep.subr.mxu0 0.0
      %1898 = vmatpush1.msra.mxu0 %v1652
      %1899 = vmatprep.subr.mxu0 0.0
      %1900 = vmatpush1.msra.mxu0 %v1651
      %1901 = vmatprep.subr.mxu0 0.0
      %1902 = vmatpush1.msra.mxu0 %v1650
      %1903 = vmatprep.subr.mxu0 0.0
      %1904 = vmatpush1.msra.mxu0 %v1649
      %1905 = vmatprep.subr.mxu0 0.0
      %1906 = vmatpush1.msra.mxu0 %v1648
      %1907 = vmatprep.subr.mxu0 0.0
      %1908 = vmatpush2.msra.mxu0 0.0
      %1909 = vmatprep.subr.mxu0 0.0
      %1910 = vmatpush2.msra.mxu0 0.0
      %1911 = vmatprep.subr.mxu0 0.0
      %1912 = vmatpush2.msra.mxu0 0.0
      %1913 = vmatprep.subr.mxu0 0.0
      %1914 = vmatpush2.msra.mxu0 0.0
      %1915 = vmatprep.subr.mxu0 0.0
      %1916 = vmatpush2.msra.mxu0 0.0
      %1917 = vmatprep.subr.mxu0 0.0
      %1918 = vmatpush2.msra.mxu0 0.0
      %1919 = vmatprep.subr.mxu0 0.0
      %1920 = vmatpush2.msra.mxu0 0.0
      %1921 = vmatprep.subr.mxu0 0.0
      %1922 = vmatpush2.msra.mxu0 0.0
      %1923 = vmatprep.subr.mxu0 0.0
      %1924 = vmatpush2.msra.mxu0 0.0
      %1925 = vmatprep.subr.mxu0 0.0
      %1926 = vmatpush2.msra.mxu0 0.0
      %1927 = vmatprep.subr.mxu0 0.0
      %1928 = vmatpush2.msra.mxu0 0.0
      %1929 = vmatprep.subr.mxu0 0.0
      %1930 = vmatpush2.msra.mxu0 0.0
      %1931 = vmatprep.subr.mxu0 0.0
      %1932 = vmatpush2.msra.mxu0 0.0
      %1933 = vmatprep.subr.mxu0 0.0
      %1934 = vmatpush2.msra.mxu0 0.0
      %1935 = vmatprep.subr.mxu0 0.0
      %1936 = vmatpush2.msra.mxu0 0.0
      %1937 = vmatprep.subr.mxu0 0.0
      %1938 = vmatpush2.msra.mxu0 0.0
      %1939 = vmatprep.mubr.f32.mxu0 0.0
      %1940 = vmatmul.mubr.f32.gmra.mxu0 %v1873
      %v1941 = vpop.f32.mrf.mxu0
      %v1942 = vadd.f32 0.0, %v1941
      %v1943 = vpop.f32.mrf.mxu0
      %1944 = vdwg.mxu0
      %v1945 = vmul.f32 %v1942, 0.0009765625
      %v1946 = vadd.f32 %v1945, 1e-05
      %v1947 = vrsqrt.pop %v1946
      %v1949 = vsel %vm1753, %v1947, 0
      %1951 = vmatprep.subr.mxu0 0.0
      %1952 = vmatpush1.msra.mxu0 0.0
      %1953 = vmatprep.subr.mxu0 0.0
      %1954 = vmatpush1.msra.mxu0 0.0
      %1955 = vmatprep.subr.mxu0 0.0
      %1956 = vmatpush1.msra.mxu0 0.0
      %1957 = vmatprep.subr.mxu0 0.0
      %1958 = vmatpush1.msra.mxu0 0.0
      %1959 = vmatprep.subr.mxu0 0.0
      %1960 = vmatpush1.msra.mxu0 0.0
      %1961 = vmatprep.subr.mxu0 0.0
      %1962 = vmatpush1.msra.mxu0 0.0
      %1963 = vmatprep.subr.mxu0 0.0
      %1964 = vmatpush1.msra.mxu0 0.0
      %1965 = vmatprep.subr.mxu0 0.0
      %1966 = vmatpush1.msra.mxu0 0.0
      %1967 = vmatprep.subr.mxu0 0.0
      %1968 = vmatpush1.msra.mxu0 0.0
      %1969 = vmatprep.subr.mxu0 0.0
      %1970 = vmatpush1.msra.mxu0 0.0
      %1971 = vmatprep.subr.mxu0 0.0
      %1972 = vmatpush1.msra.mxu0 0.0
      %1973 = vmatprep.subr.mxu0 0.0
      %1974 = vmatpush1.msra.mxu0 0.0
      %1975 = vmatprep.subr.mxu0 0.0
      %1976 = vmatpush1.msra.mxu0 0.0
      %1977 = vmatprep.subr.mxu0 0.0
      %1978 = vmatpush1.msra.mxu0 0.0
      %1979 = vmatprep.subr.mxu0 0.0
      %1980 = vmatpush1.msra.mxu0 0.0
      %1981 = vmatprep.subr.mxu0 0.0
      %1982 = vmatpush1.msra.mxu0 %v1759
      %1983 = vmatprep.subr.mxu0 0.0
      %1984 = vmatpush2.msra.mxu0 0.0
      %1985 = vmatprep.subr.mxu0 0.0
      %1986 = vmatpush2.msra.mxu0 0.0
      %1987 = vmatprep.subr.mxu0 0.0
      %1988 = vmatpush2.msra.mxu0 0.0
      %1989 = vmatprep.subr.mxu0 0.0
      %1990 = vmatpush2.msra.mxu0 0.0
      %1991 = vmatprep.subr.mxu0 0.0
      %1992 = vmatpush2.msra.mxu0 0.0
      %1993 = vmatprep.subr.mxu0 0.0
      %1994 = vmatpush2.msra.mxu0 0.0
      %1995 = vmatprep.subr.mxu0 0.0
      %1996 = vmatpush2.msra.mxu0 0.0
      %1997 = vmatprep.subr.mxu0 0.0
      %1998 = vmatpush2.msra.mxu0 0.0
      %1999 = vmatprep.subr.mxu0 0.0
      %2000 = vmatpush2.msra.mxu0 0.0
      %2001 = vmatprep.subr.mxu0 0.0
      %2002 = vmatpush2.msra.mxu0 0.0
      %2003 = vmatprep.subr.mxu0 0.0
      %2004 = vmatpush2.msra.mxu0 0.0
      %2005 = vmatprep.subr.mxu0 0.0
      %2006 = vmatpush2.msra.mxu0 0.0
      %2007 = vmatprep.subr.mxu0 0.0
      %2008 = vmatpush2.msra.mxu0 0.0
      %2009 = vmatprep.subr.mxu0 0.0
      %2010 = vmatpush2.msra.mxu0 0.0
      %2011 = vmatprep.subr.mxu0 0.0
      %2012 = vmatpush2.msra.mxu0 0.0
      %2013 = vmatprep.subr.mxu0 0.0
      %2014 = vmatpush2.msra.mxu0 0.0
      %2015 = vmatprep.mubr.f32.mxu0 0.0
      %2016 = vmatmul.mubr.f32.gmra.mxu0 %v1949
      %v2017 = vpop.f32.mrf.mxu0
      %v2018 = vadd.f32 0.0, %v2017
      %v2019 = vpop.f32.mrf.mxu0
      %2020 = vdwg.mxu0
      %v2021 = vlaneseq
      %v2022 = vshrl.u32 %v2021, 7
      %v2023 = vsub.s32 0, %v2022
      %v2024 = vrot.slane %v2018, %v2023
      %v2025 = vmul.f32 %v1835, %v2024
      %v2026 = vmul.f32 %v1836, %v2024
      %v2027 = vmul.f32 %v1837, %v2024
      %v2028 = vmul.f32 %v1838, %v2024
      %v2029 = vmul.f32 %v1839, %v2024
      %v2030 = vmul.f32 %v1840, %v2024
      %v2031 = vmul.f32 %v1841, %v2024
      %v2032 = vmul.f32 %v1842, %v2024
      %v2033 = vld [vmem:[%s3] sm:$0x1]
      %v2035 = vlaneseq
      %v2036 = vshrl.u32 %v2035, 7
      %v2037 = vsub.s32 0, %v2036
      %v2038 = vrot.slane %v2033, %v2037
      %v2040 = vmul.f32 %v2025, %v2038
      %v2041 = vmul.f32 %v2026, %v2038
      %v2042 = vmul.f32 %v2027, %v2038
      %v2043 = vmul.f32 %v2028, %v2038
      %v2044 = vmul.f32 %v2029, %v2038
      %v2045 = vmul.f32 %v2030, %v2038
      %v2046 = vmul.f32 %v2031, %v2038
      %v2047 = vmul.f32 %v2032, %v2038
      %v2048 = vld [vmem:[%s4] sm:$0x1]
      %v2050 = vlaneseq
      %v2051 = vshrl.u32 %v2050, 7
      %v2052 = vsub.s32 0, %v2051
      %v2053 = vrot.slane %v2048, %v2052
      %v2055 = vadd.f32 %v2040, %v2053
      %v2056 = vadd.f32 %v2041, %v2053
      %v2057 = vadd.f32 %v2042, %v2053
      %v2058 = vadd.f32 %v2043, %v2053
      %v2059 = vadd.f32 %v2044, %v2053
      %v2060 = vadd.f32 %v2045, %v2053
      %v2061 = vadd.f32 %v2046, %v2053
      %v2062 = vadd.f32 %v2047, %v2053
      %v2063 = vpack.c.bf16 %v2056, %v2055
      %v2064 = vpack.c.bf16 %v2058, %v2057
      %v2065 = vpack.c.bf16 %v2060, %v2059
      %v2066 = vpack.c.bf16 %v2062, %v2061
      %v2067 = vld [vmem:[%s7] sm:$0xf]
      %v2068 = vld [vmem:[%s7 + $0x4] sm:$0xf]
      %v2069 = vld [vmem:[%s7 + $0x8] sm:$0xf]
      %v2070 = vld [vmem:[%s7 + $0xc] sm:$0xf]
      %v2071 = vld [vmem:[%s7 + $0x10] sm:$0xf]
      %v2072 = vld [vmem:[%s7 + $0x14] sm:$0xf]
      %v2073 = vld [vmem:[%s7 + $0x18] sm:$0xf]
      %v2074 = vld [vmem:[%s7 + $0x1c] sm:$0xf]
      %v2075 = vld [vmem:[%s8] sm:$0x1]
      %v2077 = vlaneseq
      %v2078 = vshrl.u32 %v2077, 7
      %v2079 = vsub.s32 0, %v2078
      %v2080 = vrot.slane %v2075, %v2079
      %v2090 = vunpack.c.l.b16 %v2067
      %v2091 = vunpack.c.l.b16 %v2068
      %v2092 = vunpack.c.l.b16 %v2069
      %v2093 = vunpack.c.l.b16 %v2070
      %v2094 = vunpack.c.l.b16 %v2071
      %v2095 = vunpack.c.l.b16 %v2072
      %v2096 = vunpack.c.l.b16 %v2073
      %v2097 = vunpack.c.l.b16 %v2074
      %v2098 = vpack.c.b16 %v2091, %v2090
      %v2099 = vpack.c.b16 %v2093, %v2092
      %v2100 = vpack.c.b16 %v2095, %v2094
      %v2101 = vpack.c.b16 %v2097, %v2096
      %v2107 = vsel %vm1657, %v2063, 0
      %v2110 = vsel %vm1657, %v2064, 0
      %v2113 = vsel %vm1657, %v2065, 0
      %v2116 = vsel %vm1657, %v2066, 0
      %2118 = vmatprep.subr.bf16.mxu0 0
      %2119 = vmatpush1.bf16.msra.mxu0 0
      %2120 = vmatprep.subr.bf16.mxu0 0
      %2121 = vmatpush1.bf16.msra.mxu0 0
      %2122 = vmatprep.subr.bf16.mxu0 0
      %2123 = vmatpush1.bf16.msra.mxu0 0
      %2124 = vmatprep.subr.bf16.mxu0 0
      %2125 = vmatpush1.bf16.msra.mxu0 0
      %2126 = vmatprep.subr.bf16.mxu0 0
      %2127 = vmatpush1.bf16.msra.mxu0 %v2101
      %2128 = vmatprep.subr.bf16.mxu0 0
      %2129 = vmatpush1.bf16.msra.mxu0 %v2100
      %2130 = vmatprep.subr.bf16.mxu0 0
      %2131 = vmatpush1.bf16.msra.mxu0 %v2099
      %2132 = vmatprep.subr.bf16.mxu0 0
      %2133 = vmatpush1.bf16.msra.mxu0 %v2098
      %2134 = vmatprep.subr.bf16.mxu0 0
      %2135 = vmatpush2.bf16.msra.mxu0 0
      %2136 = vmatprep.subr.bf16.mxu0 0
      %2137 = vmatpush2.bf16.msra.mxu0 0
      %2138 = vmatprep.subr.bf16.mxu0 0
      %2139 = vmatpush2.bf16.msra.mxu0 0
      %2140 = vmatprep.subr.bf16.mxu0 0
      %2141 = vmatpush2.bf16.msra.mxu0 0
      %2142 = vmatprep.subr.bf16.mxu0 0
      %2143 = vmatpush2.bf16.msra.mxu0 0
      %2144 = vmatprep.subr.bf16.mxu0 0
      %2145 = vmatpush2.bf16.msra.mxu0 0
      %2146 = vmatprep.subr.bf16.mxu0 0
      %2147 = vmatpush2.bf16.msra.mxu0 0
      %2148 = vmatprep.subr.bf16.mxu0 0
      %2149 = vmatpush2.bf16.msra.mxu0 0
      %2150 = vmatprep.mubr.bf16.mxu0 0
      %2151 = vmatmul.mubr.bf16.gmra.mxu0 %v2107
      %v2152 = vpop.f32.mrf.mxu0
      %v2153 = vadd.f32 %v2080, %v2152
      %v2154 = vpop.f32.mrf.mxu0
      %v2155 = vpop.f32.mrf.mxu0
      %v2156 = vadd.f32 %v2080, %v2155
      %v2157 = vpop.f32.mrf.mxu0
      %2158 = vmatprep.mubr.bf16.mxu0 0
      %2159 = vmatmul.mubr.bf16.gmra.mxu0 %v2110
      %v2160 = vpop.f32.mrf.mxu0
      %v2161 = vadd.f32 %v2080, %v2160
      %v2162 = vpop.f32.mrf.mxu0
      %v2163 = vpop.f32.mrf.mxu0
      %v2164 = vadd.f32 %v2080, %v2163
      %v2165 = vpop.f32.mrf.mxu0
      %2166 = vmatprep.mubr.bf16.mxu0 0
      %2167 = vmatmul.mubr.bf16.gmra.mxu0 %v2113
      %v2168 = vpop.f32.mrf.mxu0
      %v2169 = vadd.f32 %v2080, %v2168
      %v2170 = vpop.f32.mrf.mxu0
      %v2171 = vpop.f32.mrf.mxu0
      %v2172 = vadd.f32 %v2080, %v2171
      %v2173 = vpop.f32.mrf.mxu0
      %2174 = vmatprep.mubr.bf16.mxu0 0
      %2175 = vmatmul.mubr.bf16.gmra.mxu0 %v2116
      %v2176 = vpop.f32.mrf.mxu0
      %v2177 = vadd.f32 %v2080, %v2176
      %v2178 = vpop.f32.mrf.mxu0
      %v2179 = vpop.f32.mrf.mxu0
      %v2180 = vadd.f32 %v2080, %v2179
      %v2181 = vpop.f32.mrf.mxu0
      %2182 = vdwg.mxu0
      %2183 = vst [vmem:[%s332] sm:$0xff] %v2153
      %2184 = vst [vmem:[%s332 + $0x8] sm:$0xff] %v2156
      %2185 = vst [vmem:[%s332 + $0x10] sm:$0xff] %v2161
      %2186 = vst [vmem:[%s332 + $0x18] sm:$0xff] %v2164
      %2187 = vst [vmem:[%s332 + $0x20] sm:$0xff] %v2169
      %2188 = vst [vmem:[%s332 + $0x28] sm:$0xff] %v2172
      %2189 = vst [vmem:[%s332 + $0x30] sm:$0xff] %v2177
      %2190 = vst [vmem:[%s332 + $0x38] sm:$0xff] %v2180
      %p2191 = scmp.lt.s32.totalorder %s20, 1
      %s2192 = scalar_select %p2191, %s20, 1
      %s2193 = smul.addr %s2192, 8
      %s2194 = smul.addr %s2193, 8
      %s2195 = scalar_lea.vmem %s9, %s2194
      // Predicated region
      $region57: #{depthwise_conv3d_forward.1} parent=55 // pred_check
        %p2196 = pneg %p232
      $region58: #{depthwise_conv3d_forward.1} parent=55 // pred_check_branch
        %2198 = sbr.rel (%p2196) target = $region60
      $region59: #{depthwise_conv3d_forward.1} parent=55 // pred_region
        _
      $region60: #{depthwise_conv3d_forward.1} parent=55 // pred_fallthru
        _
    $region56: #{depthwise_conv3d_forward.1} parent=5 // pred_fallthru
      _
    %p2199 = scmp.le.s32.totalorder 2, %s15
    // Predicated region
    $region61: #{depthwise_conv3d_forward.1} parent=5 // pred_check
      %p2200 = pneg %p2199
    $region62: #{depthwise_conv3d_forward.1} parent=5 // pred_check_branch
      %2202 = sbr.rel (%p2200) target = $region64
    $region63: #{depthwise_conv3d_forward.1} parent=5 // pred_region
      %s2203 = ssub.s32 %s15, 2
      // Predicated region
      $region65: #{depthwise_conv3d_forward.1} parent=63 // pred_check
        %p2204 = pneg %p238
      $region66: #{depthwise_conv3d_forward.1} parent=63 // pred_check_branch
        %2206 = sbr.rel (%p2204) target = $region68
      $region67: #{depthwise_conv3d_forward.1} parent=63 // pred_region
        %p2207 = scmp.lt.s32.totalorder %s21, 1
        %s2208 = scalar_select %p2207, %s21, 1
        %s2209 = smul.addr %s2208, 8
        %s2210 = smul.addr %s2209, 8
        %s2211 = scalar_lea.vmem %s9, %s2210
      $region68: #{depthwise_conv3d_forward.1} parent=63 // pred_fallthru
        _
    $region64: #{depthwise_conv3d_forward.1} parent=5 // pred_fallthru
      _
  $region6: #{depthwise_conv3d_forward.1} parent=0 // loop_footer
    %s19 = sadd.s32 1, %s15
  $region7: #{depthwise_conv3d_forward.1} parent=0 // loop_footer_branch
    %14 = sbr.rel target = $region3
  $region8: #{depthwise_conv3d_forward.1} parent=0 // loop_exit
    _

</llo_original>
